<compile_context>
chip_gen: v6e
topology: v6e:2x2x1
jax: 0.10.0
libtpu: 0.0.40
codegen_flags: <defaults>
</compile_context>

<pallas_src>
import functools

import jax
import jax.numpy as jnp
import numpy as np
from jax.experimental import pallas as pl
from jax.experimental.pallas import tpu as pltpu

EPS = 1e-5


def _tpu_vmem_capacity_bytes():
    """Physical per-core VMEM (128 MiB on v5e/v6e, 64 MiB on v7x)."""
    try:
        info = pltpu.get_tpu_info()
        cap = int(getattr(info, "vmem_capacity_bytes", 0))
        if cap > 0:
            return cap
    except Exception:
        pass
    return 128 * 1024 * 1024


def _pick_cout_tile(cout, group_size, *, h, w, cin, vmem_budget, max_tile=512):
    """Largest Cout tile that divides Cout, contains whole GroupNorm groups,
    is 128-lane aligned, and fits the per-step VMEM budget (double-buffered
    blocks + f32 temporaries). Prefers 256-aligned tiles (v6e/v7x MXU width).
    Falls back to a single Cout-wide tile when no aligned divisor exists."""
    cands = [t for t in range(group_size, cout + 1, group_size)
             if cout % t == 0 and t % 128 == 0 and t <= max_tile]
    if not cands:
        # TODO(synk): Cout not a multiple of 128 (e.g. 192) falls back to one
        # (possibly masked-store) tile; pad/repack Cout upstream if it matters.
        return cout

    def footprint(t):
        x3_blk = (h + 2) * w * 3 * cin * 2        # bf16 activation block
        w_blk = 3 * 3 * cin * t * 2               # bf16 weight slab
        out_blk = h * w * t * 2                   # bf16 output slab
        small = (3 + 2) * t * 4 + t * t * 4       # packed params + gmat
        temps = 3 * h * w * t * 4                 # f32 acc / y / temporaries
        return 2 * (x3_blk + w_blk + out_blk + small) + temps

    budget = int(vmem_budget * 0.6)
    fitting = [t for t in cands if footprint(t) <= budget]
    pool = fitting if fitting else [min(cands)]
    pref = [t for t in pool if t % 256 == 0]
    return max(pref) if pref else max(pool)


def _block_kernel(x3_ref, w_ref, bp_ref, film_ref, gmat_ref, o_ref,
                  *, H, W, Cin, group_size):
    """One (batch, cout-tile) element per grid step.

    x3_ref:   (1, H+2, W, 3*Cin)  bf16; kx-shifted copies packed on channels
    w_ref:    (3, 3*Cin, Ct)      bf16 conv taps (one slab per ky)
    bp_ref:   (3, Ct)             f32 [bias b; group-mean(b); group-mean(b^2)]
    film_ref: (1, 2, Ct)          f32 [gamma*(scale+1); beta*(scale+1)+shift]
    gmat_ref: (Ct, Ct)            f32 group-membership matrix (constant block)
    o_ref:    (1, H*W, Ct)        bf16 lane-dense output slab
    """
    K = 3 * Cin
    n_inv = jnp.float32(1.0 / float(H * W * group_size))

    # ---- 3x3 conv: 3 back-to-back bf16 MXU matmuls, f32 accumulation ----
    acc = None
    for ky in range(3):
        patch = x3_ref[0, ky:ky + H].reshape(H * W, K)   # leading-dim slice
        part = jnp.dot(patch, w_ref[ky], preferred_element_type=jnp.float32)
        acc = part if acc is None else acc + part        # (H*W, Ct), no bias

    bp = bp_ref[...]
    b, b1m, b2m = bp[0:1], bp[1:2], bp[2:3]              # (1, Ct) each
    fl = film_ref[0]
    g_eff, t_eff = fl[0:1], fl[1:2]                      # (1, Ct) each

    # ---- GroupNorm stats (single pass); conv bias folded in analytically ----
    sum_c = jnp.sum(acc, axis=0, keepdims=True)          # (1, Ct)
    sumsq_c = jnp.sum(acc * acc, axis=0, keepdims=True)  # (1, Ct)
    row2 = sumsq_c + 2.0 * (b * sum_c)
    # Two independent tiny f32 dots broadcast per-group sums back to channels.
    gsum = jax.lax.dot(sum_c, gmat_ref[...],
                       precision=jax.lax.Precision.HIGHEST,
                       preferred_element_type=jnp.float32)
    gsq = jax.lax.dot(row2, gmat_ref[...],
                      precision=jax.lax.Precision.HIGHEST,
                      preferred_element_type=jnp.float32)
    mean = gsum * n_inv + b1m                 # group mean of conv(x)+b
    ey2 = gsq * n_inv + b2m                   # group mean of (conv(x)+b)^2
    var = ey2 - mean * mean
    inv = jax.lax.rsqrt(var + EPS)            # EUP rsqrt

    # ---- fold GN affine + FiLM + bias/mean centering into 2 vectors ----
    s_eff = inv * g_eff                       # (1, Ct)
    t_tot = (b - mean) * s_eff + t_eff        # (1, Ct)

    y = acc * s_eff + t_tot                   # only 2 full-slab VALU passes

    # ---- SiLU: y * sigmoid(y); exp + approx reciprocal on the EUP ----
    # TODO(synk): on v6e/v7x the post-stats elementwise could run in bf16
    # (bf16 VALU/EUP) for ~2x; pl.reciprocal is f32-only, so that needs a
    # verified bf16 sigmoid path. Kept f32 here (v5e-safe).
    sig = pl.reciprocal(1.0 + jnp.exp(-y), approx=True)
    o_ref[0] = (y * sig).astype(o_ref.dtype)


def block_forward(x_nchw, params, scale_shift=None, out_dtype=jnp.bfloat16):
    """Forward pass of Block. x_nchw: (B, Cin, H, W) f32. Returns NCHW in
    `out_dtype` (bf16 by default: halves HBM writeback; next layer re-casts)."""
    w, b, gamma, beta, groups = (params["conv_w"], params["conv_b"],
                                 params["gn_w"], params["gn_b"],
                                 params["groups"])
    B, Cin, H, W = x_nchw.shape
    Cout = w.shape[0]
    assert Cout % groups == 0
    group_size = Cout // groups

    vmem_cap = _tpu_vmem_capacity_bytes()
    vmem_limit = min(int(vmem_cap * 3 // 4), 128 * 1024 * 1024)
    cout_tile = _pick_cout_tile(Cout, group_size, h=H, w=W, cin=Cin,
                                vmem_budget=vmem_limit)
    n_ct = Cout // cout_tile

    # NCHW -> NHWC (bf16), pad spatially by 1, pack the 3 kx shifts on channels.
    # TODO(synk): on v5e (HBM-poor) / v7x (VMEM-poor) pass only x_pad
    # (B, H+2, W+2, Cin) and generate the kx taps in-kernel to avoid the 3x
    # activation stream / 3x-sized activation block.
    x_nhwc = jnp.transpose(x_nchw, (0, 2, 3, 1)).astype(jnp.bfloat16)
    x_pad = jnp.pad(x_nhwc, ((0, 0), (1, 1), (1, 1), (0, 0)))
    x3 = jnp.concatenate([x_pad[:, :, kx:kx + W, :] for kx in range(3)],
                         axis=-1)                        # (B, H+2, W, 3*Cin)

    # (Cout, Cin, 3, 3) -> (ky, kx*Cin + cin, cout) = (3, 3*Cin, Cout), bf16.
    w_taps = jnp.transpose(w, (2, 3, 1, 0)).reshape(3, 3 * Cin, Cout)
    w_taps = w_taps.astype(jnp.bfloat16)

    # Packed per-channel constants: [b; group-mean(b); group-mean(b^2)].
    bf = b.astype(jnp.float32).reshape(Cout)
    bg = bf.reshape(groups, group_size)
    b1m = jnp.repeat(jnp.mean(bg, axis=1), group_size)
    b2m = jnp.repeat(jnp.mean(bg * bg, axis=1), group_size)
    bparams = jnp.stack([bf, b1m, b2m], axis=0)          # (3, Cout) f32

    # Batch-dependent affine with FiLM folded in the wrapper.
    gamma1 = gamma.astype(jnp.float32).reshape(1, Cout)
    beta1 = beta.astype(jnp.float32).reshape(1, Cout)
    if scale_shift is not None:
        scale, shift = scale_shift
        scale = scale.reshape(B, Cout).astype(jnp.float32)
        shift = shift.reshape(B, Cout).astype(jnp.float32)
        g_eff = gamma1 * (scale + 1.0)
        t_eff = beta1 * (scale + 1.0) + shift
    else:
        g_eff = jnp.broadcast_to(gamma1, (B, Cout))
        t_eff = jnp.broadcast_to(beta1, (B, Cout))
    film = jnp.stack([g_eff, t_eff], axis=1)             # (B, 2, Cout) f32

    # Group membership matrix for ONE tile (identical for every group-aligned
    # tile -> constant block index, no per-step re-DMA).
    cg = jnp.arange(cout_tile) // group_size
    gmat = (cg[:, None] == cg[None, :]).astype(jnp.float32)

    # Hold the larger stream constant across the inner grid axis.
    x3_bytes = (H + 2) * W * 3 * Cin * 2
    w_bytes = 3 * 3 * Cin * cout_tile * 2
    if x3_bytes >= w_bytes:
        grid = (B, n_ct)
        bsel = lambda i, j: i
        csel = lambda i, j: j
    else:
        grid = (n_ct, B)
        bsel = lambda i, j: j
        csel = lambda i, j: i

    kernel = functools.partial(_block_kernel, H=H, W=W, Cin=Cin,
                               group_size=group_size)

    out_flat = pl.pallas_call(
        kernel,
        out_shape=jax.ShapeDtypeStruct((B, H * W, Cout), out_dtype),
        grid_spec=pltpu.PrefetchScalarGridSpec(
            num_scalar_prefetch=0,
            grid=grid,
            in_specs=[
                pl.BlockSpec((1, H + 2, W, 3 * Cin),
                             lambda i, j: (bsel(i, j), 0, 0, 0)),
                pl.BlockSpec((3, 3 * Cin, cout_tile),
                             lambda i, j: (0, 0, csel(i, j))),
                pl.BlockSpec((3, cout_tile), lambda i, j: (0, csel(i, j))),
                pl.BlockSpec((1, 2, cout_tile),
                             lambda i, j: (bsel(i, j), 0, csel(i, j))),
                pl.BlockSpec((cout_tile, cout_tile), lambda i, j: (0, 0)),
            ],
            out_specs=pl.BlockSpec((1, H * W, cout_tile),
                                   lambda i, j: (bsel(i, j), 0, csel(i, j))),
        ),
        compiler_params=pltpu.CompilerParams(
            dimension_semantics=("parallel", "parallel"),
            vmem_limit_bytes=vmem_limit),
    )(x3, w_taps, bparams, film, gmat)

    # TODO(synk): add a spatially tiled (two-pass GN) variant for
    # 64x64x512-class layers on v7x where even cout_tile=128 + f32 temporaries
    # press the 64 MiB VMEM; cout tiling alone cannot bound the spatial slab.
    out_nhwc = out_flat.reshape(B, H, W, Cout)            # metadata reshape
    return jnp.transpose(out_nhwc, (0, 3, 1, 2))          # NHWC -> NCHW


def block_reference(x_nchw, params, scale_shift=None):
    """Pure-JAX reference matching PyTorch Block semantics (NCHW, f32)."""
    w, b, gamma, beta, groups = (params["conv_w"], params["conv_b"],
                                 params["gn_w"], params["gn_b"],
                                 params["groups"])
    y = jax.lax.conv_general_dilated(
        x_nchw, w, window_strides=(1, 1), padding="SAME",
        dimension_numbers=("NCHW", "OIHW", "NCHW"),
        precision=jax.lax.Precision.HIGHEST)
    y = y + b[None, :, None, None]
    B, C, H, W = y.shape
    yg = y.reshape(B, groups, C // groups, H, W)
    mean = yg.mean(axis=(2, 3, 4), keepdims=True)
    var = yg.var(axis=(2, 3, 4), keepdims=True)
    yn = (yg - mean) / jnp.sqrt(var + EPS)
    yn = yn.reshape(B, C, H, W) * gamma[None, :, None, None] + beta[None, :, None, None]
    if scale_shift is not None:
        scale, shift = scale_shift
        yn = yn * (scale + 1.0) + shift
    return yn * jax.nn.sigmoid(yn)


def init_params(key, dim, dim_out, groups):
    k1, k2 = jax.random.split(key)
    fan_in = dim * 3 * 3
    bound = 1.0 / np.sqrt(fan_in)
    conv_w = jax.random.uniform(k1, (dim_out, dim, 3, 3), jnp.float32,
                                -bound, bound)
    conv_b = jax.random.uniform(k2, (dim_out,), jnp.float32, -bound, bound)
    gn_w = jnp.ones((dim_out,), jnp.float32)
    gn_b = jnp.zeros((dim_out,), jnp.float32)
    return {"conv_w": conv_w, "conv_b": conv_b, "gn_w": gn_w, "gn_b": gn_b,
            "groups": groups}


if __name__ == "__main__":
    B, Cin, Cout, H, W, groups = 2, 4, 16, 16, 16, 8

    key = jax.random.PRNGKey(0)
    kx, kp, ks, ksh = jax.random.split(key, 4)

    x = jax.random.normal(kx, (B, Cin, H, W), jnp.float32)
    params = init_params(kp, Cin, Cout, groups)

    # Exercise the scale_shift branch (shapes as in the UNet: (B, C, 1, 1)).
    scale = jax.random.normal(ks, (B, Cout, 1, 1), jnp.float32) * 0.1
    shift = jax.random.normal(ksh, (B, Cout, 1, 1), jnp.float32) * 0.1

    out = block_forward(x, params, scale_shift=(scale, shift))
    out = jax.block_until_ready(out)

    out_plain = block_forward(x, params, scale_shift=None)
    out_plain = jax.block_until_ready(out_plain)

    ref = block_reference(x, params, scale_shift=(scale, shift))
    ref_plain = block_reference(x, params, scale_shift=None)

    assert out.shape == (B, Cout, H, W)
    # bf16 MXU inputs + bf16 output store (f32 accumulation / statistics).
    np.testing.assert_allclose(np.asarray(out.astype(jnp.float32)),
                               np.asarray(ref), rtol=2e-2, atol=2e-2)
    np.testing.assert_allclose(np.asarray(out_plain.astype(jnp.float32)),
                               np.asarray(ref_plain), rtol=2e-2, atol=2e-2)

    print("KERNEL_OK")
</pallas_src>

<mosaic_0001>
module attributes {stable_mosaic.version = 11 : i64} {
  func.func @_block_kernel(%arg0: i32, %arg1: i32, %arg2: memref<1x18x16x12xbf16, #tpu.memory_space<vmem>>, %arg3: memref<3x12x16xbf16, #tpu.memory_space<vmem>>, %arg4: memref<3x16xf32, #tpu.memory_space<vmem>>, %arg5: memref<1x2x16xf32, #tpu.memory_space<vmem>>, %arg6: memref<16x16xf32, #tpu.memory_space<vmem>>, %arg7: memref<1x256x16xbf16, #tpu.memory_space<vmem>>) attributes {dimension_semantics = [#tpu.dimension_semantics<parallel>, #tpu.dimension_semantics<parallel>], iteration_bounds = array<i64: 2, 1>, scalar_prefetch = 0 : i64, scratch_operands = 0 : i64, tpu.core_type = #tpu.core_type<tc>, window_params = [{transform_indices = @transform_0, window_bounds = array<i64: 1, 18, 16, 12>}, {transform_indices = @transform_1, window_bounds = array<i64: 3, 12, 16>}, {transform_indices = @transform_2, window_bounds = array<i64: 3, 16>}, {transform_indices = @transform_3, window_bounds = array<i64: 1, 2, 16>}, {pipeline_mode = #tpu.pipeline_mode<synchronous>, transform_indices = @transform_4, window_bounds = array<i64: 16, 16>}, {transform_indices = @transform_5, window_bounds = array<i64: 1, 256, 16>}]} {
    %c0 = arith.constant 0 : index
    %c0_0 = arith.constant 0 : index
    %c0_1 = arith.constant 0 : index
    %c0_2 = arith.constant 0 : index
    %0 = vector.load %arg2[%c0, %c0_0, %c0_1, %c0_2] : memref<1x18x16x12xbf16, #tpu.memory_space<vmem>>, vector<1x16x16x12xbf16>
    %1 = vector.shape_cast %0 : vector<1x16x16x12xbf16> to vector<16x16x12xbf16>
    %2 = vector.shape_cast %1 : vector<16x16x12xbf16> to vector<256x12xbf16>
    %c0_3 = arith.constant 0 : index
    %c0_4 = arith.constant 0 : index
    %c0_5 = arith.constant 0 : index
    %3 = vector.load %arg3[%c0_3, %c0_4, %c0_5] : memref<3x12x16xbf16, #tpu.memory_space<vmem>>, vector<1x12x16xbf16>
    %4 = vector.shape_cast %3 : vector<1x12x16xbf16> to vector<12x16xbf16>
    %cst = arith.constant dense<0.000000e+00> : vector<256x16xf32>
    %5 = tpu.matmul %2, %4, %cst {dimension_numbers = #tpu.dot_dimension_numbers<[1], [0], [0], [1], [0, 0, 1, 1], [], []>} : vector<256x12xbf16>, vector<12x16xbf16>, vector<256x16xf32> -> vector<256x16xf32>
    %c0_6 = arith.constant 0 : index
    %c1 = arith.constant 1 : index
    %c0_7 = arith.constant 0 : index
    %c0_8 = arith.constant 0 : index
    %6 = vector.load %arg2[%c0_6, %c1, %c0_7, %c0_8] : memref<1x18x16x12xbf16, #tpu.memory_space<vmem>>, vector<1x16x16x12xbf16>
    %7 = vector.shape_cast %6 : vector<1x16x16x12xbf16> to vector<16x16x12xbf16>
    %8 = vector.shape_cast %7 : vector<16x16x12xbf16> to vector<256x12xbf16>
    %c1_9 = arith.constant 1 : index
    %c0_10 = arith.constant 0 : index
    %c0_11 = arith.constant 0 : index
    %9 = vector.load %arg3[%c1_9, %c0_10, %c0_11] : memref<3x12x16xbf16, #tpu.memory_space<vmem>>, vector<1x12x16xbf16>
    %10 = vector.shape_cast %9 : vector<1x12x16xbf16> to vector<12x16xbf16>
    %cst_12 = arith.constant dense<0.000000e+00> : vector<256x16xf32>
    %11 = tpu.matmul %8, %10, %cst_12 {dimension_numbers = #tpu.dot_dimension_numbers<[1], [0], [0], [1], [0, 0, 1, 1], [], []>} : vector<256x12xbf16>, vector<12x16xbf16>, vector<256x16xf32> -> vector<256x16xf32>
    %12 = arith.addf %5, %11 : vector<256x16xf32>
    %c0_13 = arith.constant 0 : index
    %c2 = arith.constant 2 : index
    %c0_14 = arith.constant 0 : index
    %c0_15 = arith.constant 0 : index
    %13 = vector.load %arg2[%c0_13, %c2, %c0_14, %c0_15] : memref<1x18x16x12xbf16, #tpu.memory_space<vmem>>, vector<1x16x16x12xbf16>
    %14 = vector.shape_cast %13 : vector<1x16x16x12xbf16> to vector<16x16x12xbf16>
    %15 = vector.shape_cast %14 : vector<16x16x12xbf16> to vector<256x12xbf16>
    %c2_16 = arith.constant 2 : index
    %c0_17 = arith.constant 0 : index
    %c0_18 = arith.constant 0 : index
    %16 = vector.load %arg3[%c2_16, %c0_17, %c0_18] : memref<3x12x16xbf16, #tpu.memory_space<vmem>>, vector<1x12x16xbf16>
    %17 = vector.shape_cast %16 : vector<1x12x16xbf16> to vector<12x16xbf16>
    %cst_19 = arith.constant dense<0.000000e+00> : vector<256x16xf32>
    %18 = tpu.matmul %15, %17, %cst_19 {dimension_numbers = #tpu.dot_dimension_numbers<[1], [0], [0], [1], [0, 0, 1, 1], [], []>} : vector<256x12xbf16>, vector<12x16xbf16>, vector<256x16xf32> -> vector<256x16xf32>
    %19 = arith.addf %12, %18 : vector<256x16xf32>
    %c0_20 = arith.constant 0 : index
    %c0_21 = arith.constant 0 : index
    %20 = vector.load %arg4[%c0_20, %c0_21] : memref<3x16xf32, #tpu.memory_space<vmem>>, vector<3x16xf32>
    %21 = vector.extract_strided_slice %20 {offsets = [0, 0], sizes = [1, 16], strides = [1, 1]} : vector<3x16xf32> to vector<1x16xf32>
    %22 = vector.extract_strided_slice %20 {offsets = [1, 0], sizes = [1, 16], strides = [1, 1]} : vector<3x16xf32> to vector<1x16xf32>
    %23 = vector.extract_strided_slice %20 {offsets = [2, 0], sizes = [1, 16], strides = [1, 1]} : vector<3x16xf32> to vector<1x16xf32>
    %c0_22 = arith.constant 0 : index
    %c0_23 = arith.constant 0 : index
    %c0_24 = arith.constant 0 : index
    %24 = vector.load %arg5[%c0_22, %c0_23, %c0_24] : memref<1x2x16xf32, #tpu.memory_space<vmem>>, vector<1x2x16xf32>
    %25 = vector.shape_cast %24 : vector<1x2x16xf32> to vector<2x16xf32>
    %26 = vector.extract_strided_slice %25 {offsets = [0, 0], sizes = [1, 16], strides = [1, 1]} : vector<2x16xf32> to vector<1x16xf32>
    %27 = vector.extract_strided_slice %25 {offsets = [1, 0], sizes = [1, 16], strides = [1, 1]} : vector<2x16xf32> to vector<1x16xf32>
    %cst_25 = arith.constant dense<0.000000e+00> : vector<16xf32>
    %28 = vector.multi_reduction <add>, %19, %cst_25 [0] : vector<256x16xf32> to vector<16xf32>
    %29 = vector.shape_cast %28 : vector<16xf32> to vector<1x16xf32>
    %30 = arith.mulf %19, %19 : vector<256x16xf32>
    %cst_26 = arith.constant dense<0.000000e+00> : vector<16xf32>
    %31 = vector.multi_reduction <add>, %30, %cst_26 [0] : vector<256x16xf32> to vector<16xf32>
    %32 = vector.shape_cast %31 : vector<16xf32> to vector<1x16xf32>
    %33 = arith.mulf %21, %29 : vector<1x16xf32>
    %cst_27 = arith.constant 2.000000e+00 : f32
    %34 = vector.broadcast %cst_27 : f32 to vector<1x16xf32>
    %35 = arith.mulf %34, %33 : vector<1x16xf32>
    %36 = arith.addf %32, %35 : vector<1x16xf32>
    %c0_28 = arith.constant 0 : index
    %c0_29 = arith.constant 0 : index
    %37 = vector.load %arg6[%c0_28, %c0_29] : memref<16x16xf32, #tpu.memory_space<vmem>>, vector<16x16xf32>
    %cst_30 = arith.constant dense<0.000000e+00> : vector<1x16xf32>
    %38 = tpu.matmul %29, %37, %cst_30 {dimension_numbers = #tpu.dot_dimension_numbers<[1], [0], [0], [1], [0, 0, 1, 1], [], []>, precision = #tpu.contract_precision<fp32>} : vector<1x16xf32>, vector<16x16xf32>, vector<1x16xf32> -> vector<1x16xf32>
    %c0_31 = arith.constant 0 : index
    %c0_32 = arith.constant 0 : index
    %39 = vector.load %arg6[%c0_31, %c0_32] : memref<16x16xf32, #tpu.memory_space<vmem>>, vector<16x16xf32>
    %cst_33 = arith.constant dense<0.000000e+00> : vector<1x16xf32>
    %40 = tpu.matmul %36, %39, %cst_33 {dimension_numbers = #tpu.dot_dimension_numbers<[1], [0], [0], [1], [0, 0, 1, 1], [], []>, precision = #tpu.contract_precision<fp32>} : vector<1x16xf32>, vector<16x16xf32>, vector<1x16xf32> -> vector<1x16xf32>
    %cst_34 = arith.constant 0.001953125 : f32
    %41 = vector.broadcast %cst_34 : f32 to vector<1x16xf32>
    %42 = arith.mulf %38, %41 : vector<1x16xf32>
    %43 = arith.addf %42, %22 : vector<1x16xf32>
    %cst_35 = arith.constant 0.001953125 : f32
    %44 = vector.broadcast %cst_35 : f32 to vector<1x16xf32>
    %45 = arith.mulf %40, %44 : vector<1x16xf32>
    %46 = arith.addf %45, %23 : vector<1x16xf32>
    %47 = arith.mulf %43, %43 : vector<1x16xf32>
    %48 = arith.subf %46, %47 : vector<1x16xf32>
    %cst_36 = arith.constant 9.99999974E-6 : f32
    %49 = vector.broadcast %cst_36 : f32 to vector<1x16xf32>
    %50 = arith.addf %48, %49 : vector<1x16xf32>
    %51 = math.rsqrt %50 : vector<1x16xf32>
    %52 = arith.mulf %51, %26 : vector<1x16xf32>
    %53 = arith.subf %21, %43 : vector<1x16xf32>
    %54 = arith.mulf %53, %52 : vector<1x16xf32>
    %55 = arith.addf %54, %27 : vector<1x16xf32>
    %56 = vector.broadcast %52 : vector<1x16xf32> to vector<256x16xf32>
    %57 = arith.mulf %19, %56 : vector<256x16xf32>
    %58 = vector.broadcast %55 : vector<1x16xf32> to vector<256x16xf32>
    %59 = arith.addf %57, %58 : vector<256x16xf32>
    %cst_37 = arith.constant 0.000000e+00 : f32
    %60 = vector.broadcast %cst_37 : f32 to vector<256x16xf32>
    %61 = arith.subf %60, %59 : vector<256x16xf32>
    %62 = math.exp %61 : vector<256x16xf32>
    %cst_38 = arith.constant 1.000000e+00 : f32
    %63 = vector.broadcast %cst_38 : f32 to vector<256x16xf32>
    %64 = arith.addf %63, %62 : vector<256x16xf32>
    %65 = tpu.reciprocal %64 {approx = true} : vector<256x16xf32> -> vector<256x16xf32>
    %66 = arith.mulf %59, %65 : vector<256x16xf32>
    %67 = arith.truncf %66 : vector<256x16xf32> to vector<256x16xbf16>
    %c0_39 = arith.constant 0 : index
    %c0_40 = arith.constant 0 : index
    %c0_41 = arith.constant 0 : index
    %68 = vector.load %arg7[%c0_39, %c0_40, %c0_41] : memref<1x256x16xbf16, #tpu.memory_space<vmem>>, vector<1x256x16xbf16>
    %69 = vector.shape_cast %68 : vector<1x256x16xbf16> to vector<256x16xbf16>
    %70 = vector.shape_cast %67 : vector<256x16xbf16> to vector<1x256x16xbf16>
    tpu.vector_store %arg7[%c0_39, %c0_40, %c0_41], %70 {strides = array<i32>} : memref<1x256x16xbf16, #tpu.memory_space<vmem>>, vector<1x256x16xbf16>,
    return
  }
  func.func @transform_0(%arg0: i32, %arg1: i32) -> (i32, i32, i32, i32) {
    %c0_i32 = arith.constant 0 : i32
    %c0_i32_0 = arith.constant 0 : i32
    %c0_i32_1 = arith.constant 0 : i32
    %c0_i32_2 = arith.constant 0 : i32
    return %arg0, %c0_i32, %c0_i32_0, %c0_i32_1 : i32, i32, i32, i32
  }
  func.func @transform_1(%arg0: i32, %arg1: i32) -> (i32, i32, i32) {
    %c0_i32 = arith.constant 0 : i32
    %c0_i32_0 = arith.constant 0 : i32
    %c0_i32_1 = arith.constant 0 : i32
    return %c0_i32, %c0_i32_0, %arg1 : i32, i32, i32
  }
  func.func @transform_2(%arg0: i32, %arg1: i32) -> (i32, i32) {
    %c0_i32 = arith.constant 0 : i32
    %c0_i32_0 = arith.constant 0 : i32
    return %c0_i32, %arg1 : i32, i32
  }
  func.func @transform_3(%arg0: i32, %arg1: i32) -> (i32, i32, i32) {
    %c0_i32 = arith.constant 0 : i32
    %c0_i32_0 = arith.constant 0 : i32
    return %arg0, %c0_i32, %arg1 : i32, i32, i32
  }
  func.func @transform_4(%arg0: i32, %arg1: i32) -> (i32, i32) {
    %c0_i32 = arith.constant 0 : i32
    %c0_i32_0 = arith.constant 0 : i32
    %c0_i32_1 = arith.constant 0 : i32
    return %c0_i32, %c0_i32_0 : i32, i32
  }
  func.func @transform_5(%arg0: i32, %arg1: i32) -> (i32, i32, i32) {
    %c0_i32 = arith.constant 0 : i32
    %c0_i32_0 = arith.constant 0 : i32
    return %arg0, %c0_i32, %arg1 : i32, i32, i32
  }
}

</mosaic_0001>

<llo_original>
// kernel: tpu_custom_call.1
$region0: #{tpu_custom_call.1}
  #allocation0 [shape = 'u32[]', space=smem, size = 0x4, offset = 0x4, fixed_abs, tag = 'smem constant byte address 0x4 - core index']
  #allocation1 [shape = 'u32[144,128]{1,0:T(1,128)}', space=vmem, size = 0x12000, scoped, tag = 'internal scratch']
  %s0 = inlined_call_operand.vmem [shape: bf16[2,18,16,12], index: 0, kind: input, shape index: {}]
  %s1 = inlined_call_operand.vmem [shape: bf16[3,12,16], index: 1, kind: input, shape index: {}]
  %s2 = inlined_call_operand.vmem [shape: f32[3,16], index: 2, kind: input, shape index: {}]
  %s3 = inlined_call_operand.vmem [shape: f32[2,2,16], index: 3, kind: input, shape index: {}]
  %s4 = inlined_call_operand.vmem [shape: f32[16,16], index: 4, kind: input, shape index: {}]
  %s5 = inlined_call_operand.vmem [shape: bf16[2,256,16], index: 5, kind: output, shape index: {}]
  %s6 = sld [smem:[#allocation0]]
  $region53: #{tpu_custom_call.1} parent=0
    _
  %s8 = ssub.s32 1, %s6
  %s9 = scalar_select 0, %s8, %s6
  loop: start=0, step=1, limit=4
  $region2: #{tpu_custom_call.1} parent=0 // loop_pre_header
    _
  $region3: #{tpu_custom_call.1} parent=0 // loop_header
    %s11 = sphi 0, %s15
    %p12 = scmp.ge.s32.totalorder %s11, 4
    %s18 = sphi 0, %s30
    %s19 = sphi 0, %s26
    %s20 = sphi 0, %s18
    %s21 = sphi 0, %s19
    %s22 = sphi 0, %s20
    %s23 = sphi 0, %s21
    %s33 = sphi 0, %s35
    %s36 = sphi 0, %s33
    %s37 = sphi 0, %s36
    %s53 = sphi 0, %s37
    %s59 = sphi 0, %s61
    %s62 = sphi 0, %s59
    %s63 = sphi 0, %s62
    %s79 = sphi 0, %s63
    %s85 = sphi 0, %s87
    %s88 = sphi 0, %s85
    %s89 = sphi 0, %s88
    %s105 = sphi 0, %s89
    %s113 = sphi 0, %s115
    %s116 = sphi 0, %s113
    %s117 = sphi 0, %s116
    %s133 = sphi 0, %s117
    %s137 = sphi 0, %s137
    %s139 = sphi 0, %s137
    %s140 = sphi 0, %s139
    %s154 = sphi 0, %s140
    %s162 = sphi 0, %s164
    %s165 = sphi 0, %s162
    %s166 = sphi 0, %s165
    %s182 = sphi 0, %s166
  $region4: #{tpu_custom_call.1} parent=0 // loop_header_branch
    %14 = sbr.rel (%p12) target = $region8
  $region5: #{tpu_custom_call.1} parent=0 // loop_body
    %s16 = ssub.s32 %s11, 1
    %s17 = ssub.s32 %s11, 2
    %s24 = sadd.s32 1, %s19
    %p25 = scmp.ge.s32.totalorder %s24, 1
    %s26 = scalar_select %p25, 0, %s24
    %s27 = sadd.s32 1, %s18
    %s28 = scalar_select %p25, %s27, %s18
    %p29 = scmp.ge.s32.totalorder %s28, 2
    %s30 = scalar_select %p29, 0, %s28
    %s31 = ssub.s32 %s18, %s30
    %p32 = scmp.eq.s32.totalorder %s31, 0
    %s34 = sadd.s32 %s33, 1
    %s35 = scalar_select %p32, %s33, %s34
    %p38 = pneg %p32
    %p39 = scmp.eq.s32.totalorder %s11, 1
    %p40 = por %p38, %p39
    %p41 = scmp.ne.s32.totalorder %s33, %s36
    %p42 = scmp.eq.s32.totalorder %s11, 0
    %p43 = por %p41, %p42
    %p44 = scmp.ne.s32.totalorder %s33, %s36
    %p45 = scmp.eq.s32.totalorder %s16, 1
    %p46 = por %p44, %p45
    %p47 = scmp.ne.s32.totalorder %s36, %s37
    %p48 = scmp.eq.s32.totalorder %s16, 0
    %p49 = por %p47, %p48
    %p50 = scmp.ne.s32.totalorder %s36, %s37
    %p51 = scmp.eq.s32.totalorder %s17, 1
    %p52 = por %p50, %p51
    %p54 = scmp.ne.s32.totalorder %s37, %s53
    %p55 = scmp.eq.s32.totalorder %s17, 0
    %p56 = por %p54, %p55
    %s57 = ssub.s32 %s19, %s26
    %p58 = scmp.eq.s32.totalorder %s57, 0
    %s60 = sadd.s32 %s59, 1
    %s61 = scalar_select %p58, %s59, %s60
    %p64 = pneg %p58
    %p65 = scmp.eq.s32.totalorder %s11, 1
    %p66 = por %p64, %p65
    %p67 = scmp.ne.s32.totalorder %s59, %s62
    %p68 = scmp.eq.s32.totalorder %s11, 0
    %p69 = por %p67, %p68
    %p70 = scmp.ne.s32.totalorder %s59, %s62
    %p71 = scmp.eq.s32.totalorder %s16, 1
    %p72 = por %p70, %p71
    %p73 = scmp.ne.s32.totalorder %s62, %s63
    %p74 = scmp.eq.s32.totalorder %s16, 0
    %p75 = por %p73, %p74
    %p76 = scmp.ne.s32.totalorder %s62, %s63
    %p77 = scmp.eq.s32.totalorder %s17, 1
    %p78 = por %p76, %p77
    %p80 = scmp.ne.s32.totalorder %s63, %s79
    %p81 = scmp.eq.s32.totalorder %s17, 0
    %p82 = por %p80, %p81
    %s83 = ssub.s32 %s19, %s26
    %p84 = scmp.eq.s32.totalorder %s83, 0
    %s86 = sadd.s32 %s85, 1
    %s87 = scalar_select %p84, %s85, %s86
    %p90 = pneg %p84
    %p91 = scmp.eq.s32.totalorder %s11, 1
    %p92 = por %p90, %p91
    %p93 = scmp.ne.s32.totalorder %s85, %s88
    %p94 = scmp.eq.s32.totalorder %s11, 0
    %p95 = por %p93, %p94
    %p96 = scmp.ne.s32.totalorder %s85, %s88
    %p97 = scmp.eq.s32.totalorder %s16, 1
    %p98 = por %p96, %p97
    %p99 = scmp.ne.s32.totalorder %s88, %s89
    %p100 = scmp.eq.s32.totalorder %s16, 0
    %p101 = por %p99, %p100
    %p102 = scmp.ne.s32.totalorder %s88, %s89
    %p103 = scmp.eq.s32.totalorder %s17, 1
    %p104 = por %p102, %p103
    %p106 = scmp.ne.s32.totalorder %s89, %s105
    %p107 = scmp.eq.s32.totalorder %s17, 0
    %p108 = por %p106, %p107
    %s109 = ssub.s32 %s18, %s30
    %s110 = ssub.s32 %s19, %s26
    %s111 = sor.u32 %s109, %s110
    %p112 = scmp.eq.s32.totalorder %s111, 0
    %s114 = sadd.s32 %s113, 1
    %s115 = scalar_select %p112, %s113, %s114
    %p118 = pneg %p112
    %p119 = scmp.eq.s32.totalorder %s11, 1
    %p120 = por %p118, %p119
    %p121 = scmp.ne.s32.totalorder %s113, %s116
    %p122 = scmp.eq.s32.totalorder %s11, 0
    %p123 = por %p121, %p122
    %p124 = scmp.ne.s32.totalorder %s113, %s116
    %p125 = scmp.eq.s32.totalorder %s16, 1
    %p126 = por %p124, %p125
    %p127 = scmp.ne.s32.totalorder %s116, %s117
    %p128 = scmp.eq.s32.totalorder %s16, 0
    %p129 = por %p127, %p128
    %p130 = scmp.ne.s32.totalorder %s116, %s117
    %p131 = scmp.eq.s32.totalorder %s17, 1
    %p132 = por %p130, %p131
    %p134 = scmp.ne.s32.totalorder %s117, %s133
    %p135 = scmp.eq.s32.totalorder %s17, 0
    %p136 = por %p134, %p135
    %s138 = sadd.s32 %s137, 1
    %p141 = scmp.eq.s32.totalorder %s11, 1
    %p142 = scmp.ne.s32.totalorder %s137, %s139
    %p143 = scmp.eq.s32.totalorder %s11, 0
    %p144 = por %p142, %p143
    %p145 = scmp.ne.s32.totalorder %s137, %s139
    %p146 = scmp.eq.s32.totalorder %s16, 1
    %p147 = por %p145, %p146
    %p148 = scmp.ne.s32.totalorder %s139, %s140
    %p149 = scmp.eq.s32.totalorder %s16, 0
    %p150 = por %p148, %p149
    %p151 = scmp.ne.s32.totalorder %s139, %s140
    %p152 = scmp.eq.s32.totalorder %s17, 1
    %p153 = por %p151, %p152
    %p155 = scmp.ne.s32.totalorder %s140, %s154
    %p156 = scmp.eq.s32.totalorder %s17, 0
    %p157 = por %p155, %p156
    %s158 = ssub.s32 %s18, %s30
    %s159 = ssub.s32 %s19, %s26
    %s160 = sor.u32 %s158, %s159
    %p161 = scmp.eq.s32.totalorder %s160, 0
    %s163 = sadd.s32 %s162, 1
    %s164 = scalar_select %p161, %s162, %s163
    %p167 = pneg %p161
    %p168 = scmp.eq.s32.totalorder %s11, 1
    %p169 = por %p167, %p168
    %p170 = scmp.ne.s32.totalorder %s162, %s165
    %p171 = scmp.eq.s32.totalorder %s11, 0
    %p172 = por %p170, %p171
    %p173 = scmp.ne.s32.totalorder %s162, %s165
    %p174 = scmp.eq.s32.totalorder %s16, 1
    %p175 = por %p173, %p174
    %p176 = scmp.ne.s32.totalorder %s165, %s166
    %p177 = scmp.eq.s32.totalorder %s16, 0
    %p178 = por %p176, %p177
    %p179 = scmp.ne.s32.totalorder %s165, %s166
    %p180 = scmp.eq.s32.totalorder %s17, 1
    %p181 = por %p179, %p180
    %p183 = scmp.ne.s32.totalorder %s166, %s182
    %p184 = scmp.eq.s32.totalorder %s17, 0
    %p185 = por %p183, %p184
    %p186 = scmp.le.s32.totalorder 1, %s11
    %p187 = scmp.lt.s32.totalorder %s11, 3
    %p188 = pnand %p186, %p187
    %p189 = pneg %p188
    // Predicated region
    $region9: #{tpu_custom_call.1} parent=5 // pred_check
      _
    $region10: #{tpu_custom_call.1} parent=5 // pred_check_branch
      %191 = sbr.rel (%p188) target = $region12
    $region11: #{tpu_custom_call.1} parent=5 // pred_region
      %s192 = ssub.s32 %s11, 1
      // Predicated region
      $region13: #{tpu_custom_call.1} parent=11 // pred_check
        %p193 = pneg %p75
      $region14: #{tpu_custom_call.1} parent=11 // pred_check_branch
        %195 = sbr.rel (%p193) target = $region16
      $region15: #{tpu_custom_call.1} parent=11 // pred_region
        %p196 = scmp.lt.s32.totalorder %s21, 0
        %s197 = scalar_select %p196, %s21, 0
        %s198 = smul.addr %s197, 4
        %s199 = scalar_lea.vmem %s1, %s198
      $region16: #{tpu_custom_call.1} parent=11 // pred_fallthru
        _
      // Predicated region
      $region17: #{tpu_custom_call.1} parent=11 // pred_check
        %p200 = pneg %p101
      $region18: #{tpu_custom_call.1} parent=11 // pred_check_branch
        %202 = sbr.rel (%p200) target = $region20
      $region19: #{tpu_custom_call.1} parent=11 // pred_region
        %p203 = scmp.lt.s32.totalorder %s21, 0
        %s204 = scalar_select %p203, %s21, 0
        %s205 = smul.addr %s204, 4
        %s206 = scalar_lea.vmem %s2, %s205
      $region20: #{tpu_custom_call.1} parent=11 // pred_fallthru
        _
      // Predicated region
      $region21: #{tpu_custom_call.1} parent=11 // pred_check
        %p207 = pneg %p150
      $region22: #{tpu_custom_call.1} parent=11 // pred_check_branch
        %209 = sbr.rel (%p207) target = $region24
      $region23: #{tpu_custom_call.1} parent=11 // pred_region
        _
      $region24: #{tpu_custom_call.1} parent=11 // pred_fallthru
        _
    $region12: #{tpu_custom_call.1} parent=5 // pred_fallthru
      _
    %p210 = scmp.lt.s32.totalorder %s11, 2
    // Predicated region
    $region25: #{tpu_custom_call.1} parent=5 // pred_check
      %p211 = pneg %p210
    $region26: #{tpu_custom_call.1} parent=5 // pred_check_branch
      %213 = sbr.rel (%p211) target = $region28
    $region27: #{tpu_custom_call.1} parent=5 // pred_region
      // Predicated region
      $region29: #{tpu_custom_call.1} parent=27 // pred_check
        %p214 = pneg %p43
      $region30: #{tpu_custom_call.1} parent=27 // pred_check_branch
        %216 = sbr.rel (%p214) target = $region32
      $region31: #{tpu_custom_call.1} parent=27 // pred_region
        %p217 = scmp.lt.s32.totalorder %s18, 1
        %s218 = scalar_select %p217, %s18, 1
        %s219 = smul.addr %s218, 36
        %s220 = smul.addr %s219, 4
        %s221 = scalar_lea.vmem %s0, %s220
      $region32: #{tpu_custom_call.1} parent=27 // pred_fallthru
        _
      // Predicated region
      $region33: #{tpu_custom_call.1} parent=27 // pred_check
        %p222 = pneg %p123
      $region34: #{tpu_custom_call.1} parent=27 // pred_check_branch
        %224 = sbr.rel (%p222) target = $region36
      $region35: #{tpu_custom_call.1} parent=27 // pred_region
        %p225 = scmp.lt.s32.totalorder %s18, 1
        %s226 = scalar_select %p225, %s18, 1
        %p227 = scmp.lt.s32.totalorder %s19, 0
        %s228 = scalar_select %p227, %s19, 0
        %s229 = sadd.s32 %s228, %s226
        %s230 = smul.addr %s229, 2
        %s231 = scalar_lea.vmem %s3, %s230
      $region36: #{tpu_custom_call.1} parent=27 // pred_fallthru
        _
    $region28: #{tpu_custom_call.1} parent=5 // pred_fallthru
      _
    %p232 = scmp.le.s32.totalorder 1, %s11
    %p233 = scmp.lt.s32.totalorder %s11, 3
    %p234 = pnand %p232, %p233
    %p235 = pneg %p234
    // Predicated region
    $region37: #{tpu_custom_call.1} parent=5 // pred_check
      _
    $region38: #{tpu_custom_call.1} parent=5 // pred_check_branch
      %237 = sbr.rel (%p234) target = $region40
    $region39: #{tpu_custom_call.1} parent=5 // pred_region
      %s238 = ssub.s32 %s11, 1
      %p239 = scmp.lt.s32.totalorder %s20, 1
      %s240 = scalar_select %p239, %s20, 1
      %s241 = smul.addr %s240, 36
      %s242 = smul.addr %s241, 4
      %s243 = scalar_lea.vmem %s0, %s242
      %p244 = pneg %p49
      %p245 = pneg %p46
      %p246 = scmp.lt.s32.totalorder %s21, 0
      %s247 = scalar_select %p246, %s21, 0
      %s248 = smul.addr %s247, 4
      %s249 = scalar_lea.vmem %s1, %s248
      %p250 = pneg %p75
      %p251 = pneg %p72
      %p252 = scmp.lt.s32.totalorder %s21, 0
      %s253 = scalar_select %p252, %s21, 0
      %s254 = smul.addr %s253, 4
      %s255 = scalar_lea.vmem %s2, %s254
      %p256 = pneg %p101
      %p257 = pneg %p98
      %p258 = scmp.lt.s32.totalorder %s20, 1
      %s259 = scalar_select %p258, %s20, 1
      %p260 = scmp.lt.s32.totalorder %s21, 0
      %s261 = scalar_select %p260, %s21, 0
      %s262 = sadd.s32 %s261, %s259
      %s263 = smul.addr %s262, 2
      %s264 = scalar_lea.vmem %s3, %s263
      %p265 = pneg %p129
      %p266 = pneg %p126
      %p267 = pneg %p150
      %p268 = pneg %p147
      %p269 = pneg %p178
      %p270 = pneg %p175
      %p271 = scmp.lt.s32.totalorder %s20, 1
      %s272 = scalar_select %p271, %s20, 1
      %p273 = scmp.lt.s32.totalorder %s21, 0
      %s274 = scalar_select %p273, %s21, 0
      %s275 = smul.addr %s272, 32
      %s276 = sadd.s32 %s274, %s275
      %s277 = smul.addr %s276, 4
      %s278 = scalar_lea.vmem %s5, %s277
      %p279 = scmp.lt.s32.totalorder %s20, 1
      %s280 = scalar_select %p279, %s20, 1
      %s281 = smul.addr %s280, 36
      %s282 = smul.addr %s281, 4
      %s283 = scalar_lea.vmem %s0, %s282
      %p284 = scmp.lt.s32.totalorder %s21, 0
      %s285 = scalar_select %p284, %s21, 0
      %s286 = smul.addr %s285, 4
      %s287 = scalar_lea.vmem %s1, %s286
      %p288 = scmp.lt.s32.totalorder %s21, 0
      %s289 = scalar_select %p288, %s21, 0
      %s290 = smul.addr %s289, 4
      %s291 = scalar_lea.vmem %s2, %s290
      %p292 = scmp.lt.s32.totalorder %s20, 1
      %s293 = scalar_select %p292, %s20, 1
      %p294 = scmp.lt.s32.totalorder %s21, 0
      %s295 = scalar_select %p294, %s21, 0
      %s296 = sadd.s32 %s295, %s293
      %s297 = smul.addr %s296, 2
      %s298 = scalar_lea.vmem %s3, %s297
      %p299 = scmp.lt.s32.totalorder %s20, 1
      %s300 = scalar_select %p299, %s20, 1
      %p301 = scmp.lt.s32.totalorder %s21, 0
      %s302 = scalar_select %p301, %s21, 0
      %s303 = smul.addr %s300, 32
      %s304 = sadd.s32 %s302, %s303
      %s305 = smul.addr %s304, 4
      %s306 = scalar_lea.vmem %s5, %s305
      %v308 = vld [vmem:[%s283] sm:$0xf]
      %v309 = vld [vmem:[%s283 + $0x4] sm:$0xf]
      %v310 = vld [vmem:[%s283 + $0x8] sm:$0xf]
      %v311 = vld [vmem:[%s283 + $0xc] sm:$0xf]
      %v312 = vld [vmem:[%s283 + $0x10] sm:$0xf]
      %v313 = vld [vmem:[%s283 + $0x14] sm:$0xf]
      %v314 = vld [vmem:[%s283 + $0x18] sm:$0xf]
      %v315 = vld [vmem:[%s283 + $0x1c] sm:$0xf]
      %v316 = vld [vmem:[%s283 + $0x20] sm:$0xf]
      %v317 = vld [vmem:[%s283 + $0x24] sm:$0xf]
      %v318 = vld [vmem:[%s283 + $0x28] sm:$0xf]
      %v319 = vld [vmem:[%s283 + $0x2c] sm:$0xf]
      %v320 = vld [vmem:[%s283 + $0x30] sm:$0xf]
      %v321 = vld [vmem:[%s283 + $0x34] sm:$0xf]
      %v322 = vld [vmem:[%s283 + $0x38] sm:$0xf]
      %v323 = vld [vmem:[%s283 + $0x3c] sm:$0xf]
      %v324 = vld [vmem:[%s283 + $0x40] sm:$0xf]
      %v325 = vld [vmem:[%s283 + $0x44] sm:$0xf]
      %v326 = vld [vmem:[%s283 + $0x48] sm:$0xf]
      %v327 = vld [vmem:[%s283 + $0x4c] sm:$0xf]
      %v328 = vld [vmem:[%s283 + $0x50] sm:$0xf]
      %v329 = vld [vmem:[%s283 + $0x54] sm:$0xf]
      %v330 = vld [vmem:[%s283 + $0x58] sm:$0xf]
      %v331 = vld [vmem:[%s283 + $0x5c] sm:$0xf]
      %v332 = vld [vmem:[%s283 + $0x60] sm:$0xf]
      %v333 = vld [vmem:[%s283 + $0x64] sm:$0xf]
      %v334 = vld [vmem:[%s283 + $0x68] sm:$0xf]
      %v335 = vld [vmem:[%s283 + $0x6c] sm:$0xf]
      %v336 = vld [vmem:[%s283 + $0x70] sm:$0xf]
      %v337 = vld [vmem:[%s283 + $0x74] sm:$0xf]
      %v338 = vld [vmem:[%s283 + $0x78] sm:$0xf]
      %v339 = vld [vmem:[%s283 + $0x7c] sm:$0xf]
      %v340 = vld [vmem:[%s287] sm:$0xf]
      %v341 = vld [vmem:[%s287 + $0x4] sm:$0x3]
      %s342 = scalar_lea.vmem %s283, 8
      %v343 = vld [vmem:[%s342] sm:$0xf]
      %v344 = vld [vmem:[%s342 + $0x4] sm:$0xf]
      %v345 = vld [vmem:[%s342 + $0x8] sm:$0xf]
      %v346 = vld [vmem:[%s342 + $0xc] sm:$0xf]
      %v347 = vld [vmem:[%s342 + $0x10] sm:$0xf]
      %v348 = vld [vmem:[%s342 + $0x14] sm:$0xf]
      %v349 = vld [vmem:[%s342 + $0x18] sm:$0xf]
      %v350 = vld [vmem:[%s342 + $0x1c] sm:$0xf]
      %v351 = vld [vmem:[%s342 + $0x20] sm:$0xf]
      %v352 = vld [vmem:[%s342 + $0x24] sm:$0xf]
      %v353 = vld [vmem:[%s342 + $0x28] sm:$0xf]
      %v354 = vld [vmem:[%s342 + $0x2c] sm:$0xf]
      %v355 = vld [vmem:[%s342 + $0x30] sm:$0xf]
      %v356 = vld [vmem:[%s342 + $0x34] sm:$0xf]
      %v357 = vld [vmem:[%s342 + $0x38] sm:$0xf]
      %v358 = vld [vmem:[%s342 + $0x3c] sm:$0xf]
      %v359 = vld [vmem:[%s342 + $0x40] sm:$0xf]
      %v360 = vld [vmem:[%s342 + $0x44] sm:$0xf]
      %v361 = vld [vmem:[%s342 + $0x48] sm:$0xf]
      %v362 = vld [vmem:[%s342 + $0x4c] sm:$0xf]
      %v363 = vld [vmem:[%s342 + $0x50] sm:$0xf]
      %v364 = vld [vmem:[%s342 + $0x54] sm:$0xf]
      %v365 = vld [vmem:[%s342 + $0x58] sm:$0xf]
      %v366 = vld [vmem:[%s342 + $0x5c] sm:$0xf]
      %v367 = vld [vmem:[%s342 + $0x60] sm:$0xf]
      %v368 = vld [vmem:[%s342 + $0x64] sm:$0xf]
      %v369 = vld [vmem:[%s342 + $0x68] sm:$0xf]
      %v370 = vld [vmem:[%s342 + $0x6c] sm:$0xf]
      %v371 = vld [vmem:[%s342 + $0x70] sm:$0xf]
      %v372 = vld [vmem:[%s342 + $0x74] sm:$0xf]
      %v373 = vld [vmem:[%s342 + $0x78] sm:$0xf]
      %v374 = vld [vmem:[%s342 + $0x7c] sm:$0xf]
      %s375 = scalar_lea.vmem %s287, 8
      %v376 = vld [vmem:[%s375] sm:$0xf]
      %v377 = vld [vmem:[%s375 + $0x4] sm:$0x3]
      %v410 = vunpack.c.l.b16 %v343
      %v411 = vunpack.c.l.b16 %v344
      %v412 = vunpack.c.l.b16 %v345
      %v413 = vunpack.c.l.b16 %v346
      %v414 = vunpack.c.l.b16 %v347
      %v415 = vunpack.c.l.b16 %v348
      %v416 = vunpack.c.l.b16 %v349
      %v417 = vunpack.c.l.b16 %v350
      %v418 = vunpack.c.l.b16 %v351
      %v419 = vunpack.c.l.b16 %v352
      %v420 = vunpack.c.l.b16 %v353
      %v421 = vunpack.c.l.b16 %v354
      %v422 = vunpack.c.l.b16 %v355
      %v423 = vunpack.c.l.b16 %v356
      %v424 = vunpack.c.l.b16 %v357
      %v425 = vunpack.c.l.b16 %v358
      %v426 = vunpack.c.l.b16 %v359
      %v427 = vunpack.c.l.b16 %v360
      %v428 = vunpack.c.l.b16 %v361
      %v429 = vunpack.c.l.b16 %v362
      %v430 = vunpack.c.l.b16 %v363
      %v431 = vunpack.c.l.b16 %v364
      %v432 = vunpack.c.l.b16 %v365
      %v433 = vunpack.c.l.b16 %v366
      %v434 = vunpack.c.l.b16 %v367
      %v435 = vunpack.c.l.b16 %v368
      %v436 = vunpack.c.l.b16 %v369
      %v437 = vunpack.c.l.b16 %v370
      %v438 = vunpack.c.l.b16 %v371
      %v439 = vunpack.c.l.b16 %v372
      %v440 = vunpack.c.l.b16 %v373
      %v441 = vunpack.c.l.b16 %v374
      %v442 = vpack.c.b16 %v411, %v410
      %v443 = vpack.c.b16 %v413, %v412
      %v444 = vpack.c.b16 %v415, %v414
      %v445 = vpack.c.b16 %v417, %v416
      %v446 = vpack.c.b16 %v419, %v418
      %v447 = vpack.c.b16 %v421, %v420
      %v448 = vpack.c.b16 %v423, %v422
      %v449 = vpack.c.b16 %v425, %v424
      %v450 = vpack.c.b16 %v427, %v426
      %v451 = vpack.c.b16 %v429, %v428
      %v452 = vpack.c.b16 %v431, %v430
      %v453 = vpack.c.b16 %v433, %v432
      %v454 = vpack.c.b16 %v435, %v434
      %v455 = vpack.c.b16 %v437, %v436
      %v456 = vpack.c.b16 %v439, %v438
      %v457 = vpack.c.b16 %v441, %v440
      %v460 = vunpack.c.l.b16 %v376
      %v461 = vunpack.c.l.b16 %v377
      %v462 = vpack.c.b16 %v461, %v460
      %vm463 = vcmask 97280
      %v465 = vsel %vm463, %v442, 0
      %v468 = vsel %vm463, %v443, 0
      %v471 = vsel %vm463, %v444, 0
      %v474 = vsel %vm463, %v445, 0
      %v477 = vsel %vm463, %v446, 0
      %v480 = vsel %vm463, %v447, 0
      %v483 = vsel %vm463, %v448, 0
      %v486 = vsel %vm463, %v449, 0
      %v489 = vsel %vm463, %v450, 0
      %v492 = vsel %vm463, %v451, 0
      %v495 = vsel %vm463, %v452, 0
      %v498 = vsel %vm463, %v453, 0
      %v501 = vsel %vm463, %v454, 0
      %v504 = vsel %vm463, %v455, 0
      %v507 = vsel %vm463, %v456, 0
      %v510 = vsel %vm463, %v457, 0
      %vm512 = vcmask 1045504
      %v514 = vsel %vm512, %v462, 0
      %516 = vmatprep.subr.bf16.mxu0 0
      %517 = vmatpush1.bf16.msra.mxu0 0
      %518 = vmatprep.subr.bf16.mxu0 0
      %519 = vmatpush1.bf16.msra.mxu0 0
      %520 = vmatprep.subr.bf16.mxu0 0
      %521 = vmatpush1.bf16.msra.mxu0 0
      %522 = vmatprep.subr.bf16.mxu0 0
      %523 = vmatpush1.bf16.msra.mxu0 0
      %524 = vmatprep.subr.bf16.mxu0 0
      %525 = vmatpush1.bf16.msra.mxu0 0
      %526 = vmatprep.subr.bf16.mxu0 0
      %527 = vmatpush1.bf16.msra.mxu0 0
      %528 = vmatprep.subr.bf16.mxu0 0
      %529 = vmatpush1.bf16.msra.mxu0 0
      %530 = vmatprep.subr.bf16.mxu0 0
      %531 = vmatpush1.bf16.msra.mxu0 %v514
      %532 = vmatprep.subr.bf16.mxu0 0
      %533 = vmatpush2.bf16.msra.mxu0 0
      %534 = vmatprep.subr.bf16.mxu0 0
      %535 = vmatpush2.bf16.msra.mxu0 0
      %536 = vmatprep.subr.bf16.mxu0 0
      %537 = vmatpush2.bf16.msra.mxu0 0
      %538 = vmatprep.subr.bf16.mxu0 0
      %539 = vmatpush2.bf16.msra.mxu0 0
      %540 = vmatprep.subr.bf16.mxu0 0
      %541 = vmatpush2.bf16.msra.mxu0 0
      %542 = vmatprep.subr.bf16.mxu0 0
      %543 = vmatpush2.bf16.msra.mxu0 0
      %544 = vmatprep.subr.bf16.mxu0 0
      %545 = vmatpush2.bf16.msra.mxu0 0
      %546 = vmatprep.subr.bf16.mxu0 0
      %547 = vmatpush2.bf16.msra.mxu0 0
      %548 = vmatprep.mubr.bf16.mxu0 0
      %549 = vmatmul.mubr.bf16.gmra.mxu0 %v465
      %v550 = vpop.f32.mrf.mxu0
      %v551 = vadd.f32 0.0, %v550
      %v552 = vpop.f32.mrf.mxu0
      %v553 = vpop.f32.mrf.mxu0
      %v554 = vadd.f32 0.0, %v553
      %v555 = vpop.f32.mrf.mxu0
      %556 = vmatprep.mubr.bf16.mxu0 0
      %557 = vmatmul.mubr.bf16.gmra.mxu0 %v468
      %v558 = vpop.f32.mrf.mxu0
      %v559 = vadd.f32 0.0, %v558
      %v560 = vpop.f32.mrf.mxu0
      %v561 = vpop.f32.mrf.mxu0
      %v562 = vadd.f32 0.0, %v561
      %v563 = vpop.f32.mrf.mxu0
      %564 = vmatprep.mubr.bf16.mxu0 0
      %565 = vmatmul.mubr.bf16.gmra.mxu0 %v471
      %v566 = vpop.f32.mrf.mxu0
      %v567 = vadd.f32 0.0, %v566
      %v568 = vpop.f32.mrf.mxu0
      %v569 = vpop.f32.mrf.mxu0
      %v570 = vadd.f32 0.0, %v569
      %v571 = vpop.f32.mrf.mxu0
      %572 = vmatprep.mubr.bf16.mxu0 0
      %573 = vmatmul.mubr.bf16.gmra.mxu0 %v474
      %v574 = vpop.f32.mrf.mxu0
      %v575 = vadd.f32 0.0, %v574
      %v576 = vpop.f32.mrf.mxu0
      %v577 = vpop.f32.mrf.mxu0
      %v578 = vadd.f32 0.0, %v577
      %v579 = vpop.f32.mrf.mxu0
      %580 = vmatprep.mubr.bf16.mxu0 0
      %581 = vmatmul.mubr.bf16.gmra.mxu0 %v477
      %v582 = vpop.f32.mrf.mxu0
      %v583 = vadd.f32 0.0, %v582
      %v584 = vpop.f32.mrf.mxu0
      %v585 = vpop.f32.mrf.mxu0
      %v586 = vadd.f32 0.0, %v585
      %v587 = vpop.f32.mrf.mxu0
      %588 = vmatprep.mubr.bf16.mxu0 0
      %589 = vmatmul.mubr.bf16.gmra.mxu0 %v480
      %v590 = vpop.f32.mrf.mxu0
      %v591 = vadd.f32 0.0, %v590
      %v592 = vpop.f32.mrf.mxu0
      %v593 = vpop.f32.mrf.mxu0
      %v594 = vadd.f32 0.0, %v593
      %v595 = vpop.f32.mrf.mxu0
      %596 = vmatprep.mubr.bf16.mxu0 0
      %597 = vmatmul.mubr.bf16.gmra.mxu0 %v483
      %v598 = vpop.f32.mrf.mxu0
      %v599 = vadd.f32 0.0, %v598
      %v600 = vpop.f32.mrf.mxu0
      %v601 = vpop.f32.mrf.mxu0
      %v602 = vadd.f32 0.0, %v601
      %v603 = vpop.f32.mrf.mxu0
      %604 = vmatprep.mubr.bf16.mxu0 0
      %605 = vmatmul.mubr.bf16.gmra.mxu0 %v486
      %v606 = vpop.f32.mrf.mxu0
      %v607 = vadd.f32 0.0, %v606
      %v608 = vpop.f32.mrf.mxu0
      %v609 = vpop.f32.mrf.mxu0
      %v610 = vadd.f32 0.0, %v609
      %v611 = vpop.f32.mrf.mxu0
      %612 = vmatprep.mubr.bf16.mxu0 0
      %613 = vmatmul.mubr.bf16.gmra.mxu0 %v489
      %v614 = vpop.f32.mrf.mxu0
      %v615 = vadd.f32 0.0, %v614
      %v616 = vpop.f32.mrf.mxu0
      %v617 = vpop.f32.mrf.mxu0
      %v618 = vadd.f32 0.0, %v617
      %v619 = vpop.f32.mrf.mxu0
      %620 = vmatprep.mubr.bf16.mxu0 0
      %621 = vmatmul.mubr.bf16.gmra.mxu0 %v492
      %v622 = vpop.f32.mrf.mxu0
      %v623 = vadd.f32 0.0, %v622
      %v624 = vpop.f32.mrf.mxu0
      %v625 = vpop.f32.mrf.mxu0
      %v626 = vadd.f32 0.0, %v625
      %v627 = vpop.f32.mrf.mxu0
      %628 = vmatprep.mubr.bf16.mxu0 0
      %629 = vmatmul.mubr.bf16.gmra.mxu0 %v495
      %v630 = vpop.f32.mrf.mxu0
      %v631 = vadd.f32 0.0, %v630
      %v632 = vpop.f32.mrf.mxu0
      %v633 = vpop.f32.mrf.mxu0
      %v634 = vadd.f32 0.0, %v633
      %v635 = vpop.f32.mrf.mxu0
      %636 = vmatprep.mubr.bf16.mxu0 0
      %637 = vmatmul.mubr.bf16.gmra.mxu0 %v498
      %v638 = vpop.f32.mrf.mxu0
      %v639 = vadd.f32 0.0, %v638
      %v640 = vpop.f32.mrf.mxu0
      %v641 = vpop.f32.mrf.mxu0
      %v642 = vadd.f32 0.0, %v641
      %v643 = vpop.f32.mrf.mxu0
      %644 = vmatprep.mubr.bf16.mxu0 0
      %645 = vmatmul.mubr.bf16.gmra.mxu0 %v501
      %v646 = vpop.f32.mrf.mxu0
      %v647 = vadd.f32 0.0, %v646
      %v648 = vpop.f32.mrf.mxu0
      %v649 = vpop.f32.mrf.mxu0
      %v650 = vadd.f32 0.0, %v649
      %v651 = vpop.f32.mrf.mxu0
      %652 = vmatprep.mubr.bf16.mxu0 0
      %653 = vmatmul.mubr.bf16.gmra.mxu0 %v504
      %v654 = vpop.f32.mrf.mxu0
      %v655 = vadd.f32 0.0, %v654
      %v656 = vpop.f32.mrf.mxu0
      %v657 = vpop.f32.mrf.mxu0
      %v658 = vadd.f32 0.0, %v657
      %v659 = vpop.f32.mrf.mxu0
      %660 = vmatprep.mubr.bf16.mxu0 0
      %661 = vmatmul.mubr.bf16.gmra.mxu0 %v507
      %v662 = vpop.f32.mrf.mxu0
      %v663 = vadd.f32 0.0, %v662
      %v664 = vpop.f32.mrf.mxu0
      %v665 = vpop.f32.mrf.mxu0
      %v666 = vadd.f32 0.0, %v665
      %v667 = vpop.f32.mrf.mxu0
      %668 = vmatprep.mubr.bf16.mxu0 0
      %669 = vmatmul.mubr.bf16.gmra.mxu0 %v510
      %v670 = vpop.f32.mrf.mxu0
      %v671 = vadd.f32 0.0, %v670
      %v672 = vpop.f32.mrf.mxu0
      %v673 = vpop.f32.mrf.mxu0
      %v674 = vadd.f32 0.0, %v673
      %v675 = vpop.f32.mrf.mxu0
      %676 = vdwg.mxu0
      %v709 = vunpack.c.l.b16 %v308
      %v710 = vunpack.c.l.b16 %v309
      %v711 = vunpack.c.l.b16 %v310
      %v712 = vunpack.c.l.b16 %v311
      %v713 = vunpack.c.l.b16 %v312
      %v714 = vunpack.c.l.b16 %v313
      %v715 = vunpack.c.l.b16 %v314
      %v716 = vunpack.c.l.b16 %v315
      %v717 = vunpack.c.l.b16 %v316
      %v718 = vunpack.c.l.b16 %v317
      %v719 = vunpack.c.l.b16 %v318
      %v720 = vunpack.c.l.b16 %v319
      %v721 = vunpack.c.l.b16 %v320
      %v722 = vunpack.c.l.b16 %v321
      %v723 = vunpack.c.l.b16 %v322
      %v724 = vunpack.c.l.b16 %v323
      %v725 = vunpack.c.l.b16 %v324
      %v726 = vunpack.c.l.b16 %v325
      %v727 = vunpack.c.l.b16 %v326
      %v728 = vunpack.c.l.b16 %v327
      %v729 = vunpack.c.l.b16 %v328
      %v730 = vunpack.c.l.b16 %v329
      %v731 = vunpack.c.l.b16 %v330
      %v732 = vunpack.c.l.b16 %v331
      %v733 = vunpack.c.l.b16 %v332
      %v734 = vunpack.c.l.b16 %v333
      %v735 = vunpack.c.l.b16 %v334
      %v736 = vunpack.c.l.b16 %v335
      %v737 = vunpack.c.l.b16 %v336
      %v738 = vunpack.c.l.b16 %v337
      %v739 = vunpack.c.l.b16 %v338
      %v740 = vunpack.c.l.b16 %v339
      %v741 = vpack.c.b16 %v710, %v709
      %v742 = vpack.c.b16 %v712, %v711
      %v743 = vpack.c.b16 %v714, %v713
      %v744 = vpack.c.b16 %v716, %v715
      %v745 = vpack.c.b16 %v718, %v717
      %v746 = vpack.c.b16 %v720, %v719
      %v747 = vpack.c.b16 %v722, %v721
      %v748 = vpack.c.b16 %v724, %v723
      %v749 = vpack.c.b16 %v726, %v725
      %v750 = vpack.c.b16 %v728, %v727
      %v751 = vpack.c.b16 %v730, %v729
      %v752 = vpack.c.b16 %v732, %v731
      %v753 = vpack.c.b16 %v734, %v733
      %v754 = vpack.c.b16 %v736, %v735
      %v755 = vpack.c.b16 %v738, %v737
      %v756 = vpack.c.b16 %v740, %v739
      %v759 = vunpack.c.l.b16 %v340
      %v760 = vunpack.c.l.b16 %v341
      %v761 = vpack.c.b16 %v760, %v759
      %v763 = vsel %vm463, %v741, 0
      %v766 = vsel %vm463, %v742, 0
      %v769 = vsel %vm463, %v743, 0
      %v772 = vsel %vm463, %v744, 0
      %v775 = vsel %vm463, %v745, 0
      %v778 = vsel %vm463, %v746, 0
      %v781 = vsel %vm463, %v747, 0
      %v784 = vsel %vm463, %v748, 0
      %v787 = vsel %vm463, %v749, 0
      %v790 = vsel %vm463, %v750, 0
      %v793 = vsel %vm463, %v751, 0
      %v796 = vsel %vm463, %v752, 0
      %v799 = vsel %vm463, %v753, 0
      %v802 = vsel %vm463, %v754, 0
      %v805 = vsel %vm463, %v755, 0
      %v808 = vsel %vm463, %v756, 0
      %v811 = vsel %vm512, %v761, 0
      %813 = vmatprep.subr.bf16.mxu0 0
      %814 = vmatpush1.bf16.msra.mxu0 0
      %815 = vmatprep.subr.bf16.mxu0 0
      %816 = vmatpush1.bf16.msra.mxu0 0
      %817 = vmatprep.subr.bf16.mxu0 0
      %818 = vmatpush1.bf16.msra.mxu0 0
      %819 = vmatprep.subr.bf16.mxu0 0
      %820 = vmatpush1.bf16.msra.mxu0 0
      %821 = vmatprep.subr.bf16.mxu0 0
      %822 = vmatpush1.bf16.msra.mxu0 0
      %823 = vmatprep.subr.bf16.mxu0 0
      %824 = vmatpush1.bf16.msra.mxu0 0
      %825 = vmatprep.subr.bf16.mxu0 0
      %826 = vmatpush1.bf16.msra.mxu0 0
      %827 = vmatprep.subr.bf16.mxu0 0
      %828 = vmatpush1.bf16.msra.mxu0 %v811
      %829 = vmatprep.subr.bf16.mxu0 0
      %830 = vmatpush2.bf16.msra.mxu0 0
      %831 = vmatprep.subr.bf16.mxu0 0
      %832 = vmatpush2.bf16.msra.mxu0 0
      %833 = vmatprep.subr.bf16.mxu0 0
      %834 = vmatpush2.bf16.msra.mxu0 0
      %835 = vmatprep.subr.bf16.mxu0 0
      %836 = vmatpush2.bf16.msra.mxu0 0
      %837 = vmatprep.subr.bf16.mxu0 0
      %838 = vmatpush2.bf16.msra.mxu0 0
      %839 = vmatprep.subr.bf16.mxu0 0
      %840 = vmatpush2.bf16.msra.mxu0 0
      %841 = vmatprep.subr.bf16.mxu0 0
      %842 = vmatpush2.bf16.msra.mxu0 0
      %843 = vmatprep.subr.bf16.mxu0 0
      %844 = vmatpush2.bf16.msra.mxu0 0
      %845 = vmatprep.mubr.bf16.mxu0 0
      %846 = vmatmul.mubr.bf16.gmra.mxu0 %v763
      %v847 = vpop.f32.mrf.mxu0
      %v848 = vadd.f32 %v551, %v847
      %v849 = vpop.f32.mrf.mxu0
      %v850 = vpop.f32.mrf.mxu0
      %v851 = vadd.f32 %v554, %v850
      %v852 = vpop.f32.mrf.mxu0
      %853 = vmatprep.mubr.bf16.mxu0 0
      %854 = vmatmul.mubr.bf16.gmra.mxu0 %v766
      %v855 = vpop.f32.mrf.mxu0
      %v856 = vadd.f32 %v559, %v855
      %v857 = vpop.f32.mrf.mxu0
      %v858 = vpop.f32.mrf.mxu0
      %v859 = vadd.f32 %v562, %v858
      %v860 = vpop.f32.mrf.mxu0
      %861 = vmatprep.mubr.bf16.mxu0 0
      %862 = vmatmul.mubr.bf16.gmra.mxu0 %v769
      %v863 = vpop.f32.mrf.mxu0
      %v864 = vadd.f32 %v567, %v863
      %v865 = vpop.f32.mrf.mxu0
      %v866 = vpop.f32.mrf.mxu0
      %v867 = vadd.f32 %v570, %v866
      %v868 = vpop.f32.mrf.mxu0
      %869 = vmatprep.mubr.bf16.mxu0 0
      %870 = vmatmul.mubr.bf16.gmra.mxu0 %v772
      %v871 = vpop.f32.mrf.mxu0
      %v872 = vadd.f32 %v575, %v871
      %v873 = vpop.f32.mrf.mxu0
      %v874 = vpop.f32.mrf.mxu0
      %v875 = vadd.f32 %v578, %v874
      %v876 = vpop.f32.mrf.mxu0
      %877 = vmatprep.mubr.bf16.mxu0 0
      %878 = vmatmul.mubr.bf16.gmra.mxu0 %v775
      %v879 = vpop.f32.mrf.mxu0
      %v880 = vadd.f32 %v583, %v879
      %v881 = vpop.f32.mrf.mxu0
      %v882 = vpop.f32.mrf.mxu0
      %v883 = vadd.f32 %v586, %v882
      %v884 = vpop.f32.mrf.mxu0
      %885 = vmatprep.mubr.bf16.mxu0 0
      %886 = vmatmul.mubr.bf16.gmra.mxu0 %v778
      %v887 = vpop.f32.mrf.mxu0
      %v888 = vadd.f32 %v591, %v887
      %v889 = vpop.f32.mrf.mxu0
      %v890 = vpop.f32.mrf.mxu0
      %v891 = vadd.f32 %v594, %v890
      %v892 = vpop.f32.mrf.mxu0
      %893 = vmatprep.mubr.bf16.mxu0 0
      %894 = vmatmul.mubr.bf16.gmra.mxu0 %v781
      %v895 = vpop.f32.mrf.mxu0
      %v896 = vadd.f32 %v599, %v895
      %v897 = vpop.f32.mrf.mxu0
      %v898 = vpop.f32.mrf.mxu0
      %v899 = vadd.f32 %v602, %v898
      %v900 = vpop.f32.mrf.mxu0
      %901 = vmatprep.mubr.bf16.mxu0 0
      %902 = vmatmul.mubr.bf16.gmra.mxu0 %v784
      %v903 = vpop.f32.mrf.mxu0
      %v904 = vadd.f32 %v607, %v903
      %v905 = vpop.f32.mrf.mxu0
      %v906 = vpop.f32.mrf.mxu0
      %v907 = vadd.f32 %v610, %v906
      %v908 = vpop.f32.mrf.mxu0
      %909 = vmatprep.mubr.bf16.mxu0 0
      %910 = vmatmul.mubr.bf16.gmra.mxu0 %v787
      %v911 = vpop.f32.mrf.mxu0
      %v912 = vadd.f32 %v615, %v911
      %v913 = vpop.f32.mrf.mxu0
      %v914 = vpop.f32.mrf.mxu0
      %v915 = vadd.f32 %v618, %v914
      %v916 = vpop.f32.mrf.mxu0
      %917 = vmatprep.mubr.bf16.mxu0 0
      %918 = vmatmul.mubr.bf16.gmra.mxu0 %v790
      %v919 = vpop.f32.mrf.mxu0
      %v920 = vadd.f32 %v623, %v919
      %v921 = vpop.f32.mrf.mxu0
      %v922 = vpop.f32.mrf.mxu0
      %v923 = vadd.f32 %v626, %v922
      %v924 = vpop.f32.mrf.mxu0
      %925 = vmatprep.mubr.bf16.mxu0 0
      %926 = vmatmul.mubr.bf16.gmra.mxu0 %v793
      %v927 = vpop.f32.mrf.mxu0
      %v928 = vadd.f32 %v631, %v927
      %v929 = vpop.f32.mrf.mxu0
      %v930 = vpop.f32.mrf.mxu0
      %v931 = vadd.f32 %v634, %v930
      %v932 = vpop.f32.mrf.mxu0
      %933 = vmatprep.mubr.bf16.mxu0 0
      %934 = vmatmul.mubr.bf16.gmra.mxu0 %v796
      %v935 = vpop.f32.mrf.mxu0
      %v936 = vadd.f32 %v639, %v935
      %v937 = vpop.f32.mrf.mxu0
      %v938 = vpop.f32.mrf.mxu0
      %v939 = vadd.f32 %v642, %v938
      %v940 = vpop.f32.mrf.mxu0
      %941 = vmatprep.mubr.bf16.mxu0 0
      %942 = vmatmul.mubr.bf16.gmra.mxu0 %v799
      %v943 = vpop.f32.mrf.mxu0
      %v944 = vadd.f32 %v647, %v943
      %v945 = vpop.f32.mrf.mxu0
      %v946 = vpop.f32.mrf.mxu0
      %v947 = vadd.f32 %v650, %v946
      %v948 = vpop.f32.mrf.mxu0
      %949 = vmatprep.mubr.bf16.mxu0 0
      %950 = vmatmul.mubr.bf16.gmra.mxu0 %v802
      %v951 = vpop.f32.mrf.mxu0
      %v952 = vadd.f32 %v655, %v951
      %v953 = vpop.f32.mrf.mxu0
      %v954 = vpop.f32.mrf.mxu0
      %v955 = vadd.f32 %v658, %v954
      %v956 = vpop.f32.mrf.mxu0
      %957 = vmatprep.mubr.bf16.mxu0 0
      %958 = vmatmul.mubr.bf16.gmra.mxu0 %v805
      %v959 = vpop.f32.mrf.mxu0
      %v960 = vadd.f32 %v663, %v959
      %v961 = vpop.f32.mrf.mxu0
      %v962 = vpop.f32.mrf.mxu0
      %v963 = vadd.f32 %v666, %v962
      %v964 = vpop.f32.mrf.mxu0
      %965 = vmatprep.mubr.bf16.mxu0 0
      %966 = vmatmul.mubr.bf16.gmra.mxu0 %v808
      %v967 = vpop.f32.mrf.mxu0
      %v968 = vadd.f32 %v671, %v967
      %v969 = vpop.f32.mrf.mxu0
      %v970 = vpop.f32.mrf.mxu0
      %v971 = vadd.f32 %v674, %v970
      %v972 = vpop.f32.mrf.mxu0
      %973 = vdwg.mxu0
      %s974 = scalar_lea.vmem %s283, 16
      %v975 = vld [vmem:[%s974] sm:$0xf]
      %v976 = vld [vmem:[%s974 + $0x4] sm:$0xf]
      %v977 = vld [vmem:[%s974 + $0x8] sm:$0xf]
      %v978 = vld [vmem:[%s974 + $0xc] sm:$0xf]
      %v979 = vld [vmem:[%s974 + $0x10] sm:$0xf]
      %v980 = vld [vmem:[%s974 + $0x14] sm:$0xf]
      %v981 = vld [vmem:[%s974 + $0x18] sm:$0xf]
      %v982 = vld [vmem:[%s974 + $0x1c] sm:$0xf]
      %v983 = vld [vmem:[%s974 + $0x20] sm:$0xf]
      %v984 = vld [vmem:[%s974 + $0x24] sm:$0xf]
      %v985 = vld [vmem:[%s974 + $0x28] sm:$0xf]
      %v986 = vld [vmem:[%s974 + $0x2c] sm:$0xf]
      %v987 = vld [vmem:[%s974 + $0x30] sm:$0xf]
      %v988 = vld [vmem:[%s974 + $0x34] sm:$0xf]
      %v989 = vld [vmem:[%s974 + $0x38] sm:$0xf]
      %v990 = vld [vmem:[%s974 + $0x3c] sm:$0xf]
      %v991 = vld [vmem:[%s974 + $0x40] sm:$0xf]
      %v992 = vld [vmem:[%s974 + $0x44] sm:$0xf]
      %v993 = vld [vmem:[%s974 + $0x48] sm:$0xf]
      %v994 = vld [vmem:[%s974 + $0x4c] sm:$0xf]
      %v995 = vld [vmem:[%s974 + $0x50] sm:$0xf]
      %v996 = vld [vmem:[%s974 + $0x54] sm:$0xf]
      %v997 = vld [vmem:[%s974 + $0x58] sm:$0xf]
      %v998 = vld [vmem:[%s974 + $0x5c] sm:$0xf]
      %v999 = vld [vmem:[%s974 + $0x60] sm:$0xf]
      %v1000 = vld [vmem:[%s974 + $0x64] sm:$0xf]
      %v1001 = vld [vmem:[%s974 + $0x68] sm:$0xf]
      %v1002 = vld [vmem:[%s974 + $0x6c] sm:$0xf]
      %v1003 = vld [vmem:[%s974 + $0x70] sm:$0xf]
      %v1004 = vld [vmem:[%s974 + $0x74] sm:$0xf]
      %v1005 = vld [vmem:[%s974 + $0x78] sm:$0xf]
      %v1006 = vld [vmem:[%s974 + $0x7c] sm:$0xf]
      %s1007 = scalar_lea.vmem %s287, 16
      %v1008 = vld [vmem:[%s1007] sm:$0xf]
      %v1009 = vld [vmem:[%s1007 + $0x4] sm:$0x3]
      %v1042 = vunpack.c.l.b16 %v975
      %v1043 = vunpack.c.l.b16 %v976
      %v1044 = vunpack.c.l.b16 %v977
      %v1045 = vunpack.c.l.b16 %v978
      %v1046 = vunpack.c.l.b16 %v979
      %v1047 = vunpack.c.l.b16 %v980
      %v1048 = vunpack.c.l.b16 %v981
      %v1049 = vunpack.c.l.b16 %v982
      %v1050 = vunpack.c.l.b16 %v983
      %v1051 = vunpack.c.l.b16 %v984
      %v1052 = vunpack.c.l.b16 %v985
      %v1053 = vunpack.c.l.b16 %v986
      %v1054 = vunpack.c.l.b16 %v987
      %v1055 = vunpack.c.l.b16 %v988
      %v1056 = vunpack.c.l.b16 %v989
      %v1057 = vunpack.c.l.b16 %v990
      %v1058 = vunpack.c.l.b16 %v991
      %v1059 = vunpack.c.l.b16 %v992
      %v1060 = vunpack.c.l.b16 %v993
      %v1061 = vunpack.c.l.b16 %v994
      %v1062 = vunpack.c.l.b16 %v995
      %v1063 = vunpack.c.l.b16 %v996
      %v1064 = vunpack.c.l.b16 %v997
      %v1065 = vunpack.c.l.b16 %v998
      %v1066 = vunpack.c.l.b16 %v999
      %v1067 = vunpack.c.l.b16 %v1000
      %v1068 = vunpack.c.l.b16 %v1001
      %v1069 = vunpack.c.l.b16 %v1002
      %v1070 = vunpack.c.l.b16 %v1003
      %v1071 = vunpack.c.l.b16 %v1004
      %v1072 = vunpack.c.l.b16 %v1005
      %v1073 = vunpack.c.l.b16 %v1006
      %v1074 = vpack.c.b16 %v1043, %v1042
      %v1075 = vpack.c.b16 %v1045, %v1044
      %v1076 = vpack.c.b16 %v1047, %v1046
      %v1077 = vpack.c.b16 %v1049, %v1048
      %v1078 = vpack.c.b16 %v1051, %v1050
      %v1079 = vpack.c.b16 %v1053, %v1052
      %v1080 = vpack.c.b16 %v1055, %v1054
      %v1081 = vpack.c.b16 %v1057, %v1056
      %v1082 = vpack.c.b16 %v1059, %v1058
      %v1083 = vpack.c.b16 %v1061, %v1060
      %v1084 = vpack.c.b16 %v1063, %v1062
      %v1085 = vpack.c.b16 %v1065, %v1064
      %v1086 = vpack.c.b16 %v1067, %v1066
      %v1087 = vpack.c.b16 %v1069, %v1068
      %v1088 = vpack.c.b16 %v1071, %v1070
      %v1089 = vpack.c.b16 %v1073, %v1072
      %v1092 = vunpack.c.l.b16 %v1008
      %v1093 = vunpack.c.l.b16 %v1009
      %v1094 = vpack.c.b16 %v1093, %v1092
      %v1096 = vsel %vm463, %v1074, 0
      %v1099 = vsel %vm463, %v1075, 0
      %v1102 = vsel %vm463, %v1076, 0
      %v1105 = vsel %vm463, %v1077, 0
      %v1108 = vsel %vm463, %v1078, 0
      %v1111 = vsel %vm463, %v1079, 0
      %v1114 = vsel %vm463, %v1080, 0
      %v1117 = vsel %vm463, %v1081, 0
      %v1120 = vsel %vm463, %v1082, 0
      %v1123 = vsel %vm463, %v1083, 0
      %v1126 = vsel %vm463, %v1084, 0
      %v1129 = vsel %vm463, %v1085, 0
      %v1132 = vsel %vm463, %v1086, 0
      %v1135 = vsel %vm463, %v1087, 0
      %v1138 = vsel %vm463, %v1088, 0
      %v1141 = vsel %vm463, %v1089, 0
      %v1144 = vsel %vm512, %v1094, 0
      %1146 = vmatprep.subr.bf16.mxu0 0
      %1147 = vmatpush1.bf16.msra.mxu0 0
      %1148 = vmatprep.subr.bf16.mxu0 0
      %1149 = vmatpush1.bf16.msra.mxu0 0
      %1150 = vmatprep.subr.bf16.mxu0 0
      %1151 = vmatpush1.bf16.msra.mxu0 0
      %1152 = vmatprep.subr.bf16.mxu0 0
      %1153 = vmatpush1.bf16.msra.mxu0 0
      %1154 = vmatprep.subr.bf16.mxu0 0
      %1155 = vmatpush1.bf16.msra.mxu0 0
      %1156 = vmatprep.subr.bf16.mxu0 0
      %1157 = vmatpush1.bf16.msra.mxu0 0
      %1158 = vmatprep.subr.bf16.mxu0 0
      %1159 = vmatpush1.bf16.msra.mxu0 0
      %1160 = vmatprep.subr.bf16.mxu0 0
      %1161 = vmatpush1.bf16.msra.mxu0 %v1144
      %1162 = vmatprep.subr.bf16.mxu0 0
      %1163 = vmatpush2.bf16.msra.mxu0 0
      %1164 = vmatprep.subr.bf16.mxu0 0
      %1165 = vmatpush2.bf16.msra.mxu0 0
      %1166 = vmatprep.subr.bf16.mxu0 0
      %1167 = vmatpush2.bf16.msra.mxu0 0
      %1168 = vmatprep.subr.bf16.mxu0 0
      %1169 = vmatpush2.bf16.msra.mxu0 0
      %1170 = vmatprep.subr.bf16.mxu0 0
      %1171 = vmatpush2.bf16.msra.mxu0 0
      %1172 = vmatprep.subr.bf16.mxu0 0
      %1173 = vmatpush2.bf16.msra.mxu0 0
      %1174 = vmatprep.subr.bf16.mxu0 0
      %1175 = vmatpush2.bf16.msra.mxu0 0
      %1176 = vmatprep.subr.bf16.mxu0 0
      %1177 = vmatpush2.bf16.msra.mxu0 0
      %1178 = vmatprep.mubr.bf16.mxu0 0
      %1179 = vmatmul.mubr.bf16.gmra.mxu0 %v1096
      %v1180 = vpop.f32.mrf.mxu0
      %v1181 = vadd.f32 0.0, %v1180
      %v1182 = vpop.f32.mrf.mxu0
      %v1183 = vpop.f32.mrf.mxu0
      %v1184 = vadd.f32 0.0, %v1183
      %v1185 = vpop.f32.mrf.mxu0
      %1186 = vmatprep.mubr.bf16.mxu0 0
      %1187 = vmatmul.mubr.bf16.gmra.mxu0 %v1099
      %v1188 = vpop.f32.mrf.mxu0
      %v1189 = vadd.f32 0.0, %v1188
      %v1190 = vpop.f32.mrf.mxu0
      %v1191 = vpop.f32.mrf.mxu0
      %v1192 = vadd.f32 0.0, %v1191
      %v1193 = vpop.f32.mrf.mxu0
      %1194 = vmatprep.mubr.bf16.mxu0 0
      %1195 = vmatmul.mubr.bf16.gmra.mxu0 %v1102
      %v1196 = vpop.f32.mrf.mxu0
      %v1197 = vadd.f32 0.0, %v1196
      %v1198 = vpop.f32.mrf.mxu0
      %v1199 = vpop.f32.mrf.mxu0
      %v1200 = vadd.f32 0.0, %v1199
      %v1201 = vpop.f32.mrf.mxu0
      %1202 = vmatprep.mubr.bf16.mxu0 0
      %1203 = vmatmul.mubr.bf16.gmra.mxu0 %v1105
      %v1204 = vpop.f32.mrf.mxu0
      %v1205 = vadd.f32 0.0, %v1204
      %v1206 = vpop.f32.mrf.mxu0
      %v1207 = vpop.f32.mrf.mxu0
      %v1208 = vadd.f32 0.0, %v1207
      %v1209 = vpop.f32.mrf.mxu0
      %1210 = vmatprep.mubr.bf16.mxu0 0
      %1211 = vmatmul.mubr.bf16.gmra.mxu0 %v1108
      %v1212 = vpop.f32.mrf.mxu0
      %v1213 = vadd.f32 0.0, %v1212
      %v1214 = vpop.f32.mrf.mxu0
      %v1215 = vpop.f32.mrf.mxu0
      %v1216 = vadd.f32 0.0, %v1215
      %v1217 = vpop.f32.mrf.mxu0
      %1218 = vmatprep.mubr.bf16.mxu0 0
      %1219 = vmatmul.mubr.bf16.gmra.mxu0 %v1111
      %v1220 = vpop.f32.mrf.mxu0
      %v1221 = vadd.f32 0.0, %v1220
      %v1222 = vpop.f32.mrf.mxu0
      %v1223 = vpop.f32.mrf.mxu0
      %v1224 = vadd.f32 0.0, %v1223
      %v1225 = vpop.f32.mrf.mxu0
      %1226 = vmatprep.mubr.bf16.mxu0 0
      %1227 = vmatmul.mubr.bf16.gmra.mxu0 %v1114
      %v1228 = vpop.f32.mrf.mxu0
      %v1229 = vadd.f32 0.0, %v1228
      %v1230 = vpop.f32.mrf.mxu0
      %v1231 = vpop.f32.mrf.mxu0
      %v1232 = vadd.f32 0.0, %v1231
      %v1233 = vpop.f32.mrf.mxu0
      %1234 = vmatprep.mubr.bf16.mxu0 0
      %1235 = vmatmul.mubr.bf16.gmra.mxu0 %v1117
      %v1236 = vpop.f32.mrf.mxu0
      %v1237 = vadd.f32 0.0, %v1236
      %v1238 = vpop.f32.mrf.mxu0
      %v1239 = vpop.f32.mrf.mxu0
      %v1240 = vadd.f32 0.0, %v1239
      %v1241 = vpop.f32.mrf.mxu0
      %1242 = vmatprep.mubr.bf16.mxu0 0
      %1243 = vmatmul.mubr.bf16.gmra.mxu0 %v1120
      %v1244 = vpop.f32.mrf.mxu0
      %v1245 = vadd.f32 0.0, %v1244
      %v1246 = vpop.f32.mrf.mxu0
      %v1247 = vpop.f32.mrf.mxu0
      %v1248 = vadd.f32 0.0, %v1247
      %v1249 = vpop.f32.mrf.mxu0
      %1250 = vmatprep.mubr.bf16.mxu0 0
      %1251 = vmatmul.mubr.bf16.gmra.mxu0 %v1123
      %v1252 = vpop.f32.mrf.mxu0
      %v1253 = vadd.f32 0.0, %v1252
      %v1254 = vpop.f32.mrf.mxu0
      %v1255 = vpop.f32.mrf.mxu0
      %v1256 = vadd.f32 0.0, %v1255
      %v1257 = vpop.f32.mrf.mxu0
      %1258 = vmatprep.mubr.bf16.mxu0 0
      %1259 = vmatmul.mubr.bf16.gmra.mxu0 %v1126
      %v1260 = vpop.f32.mrf.mxu0
      %v1261 = vadd.f32 0.0, %v1260
      %v1262 = vpop.f32.mrf.mxu0
      %v1263 = vpop.f32.mrf.mxu0
      %v1264 = vadd.f32 0.0, %v1263
      %v1265 = vpop.f32.mrf.mxu0
      %1266 = vmatprep.mubr.bf16.mxu0 0
      %1267 = vmatmul.mubr.bf16.gmra.mxu0 %v1129
      %v1268 = vpop.f32.mrf.mxu0
      %v1269 = vadd.f32 0.0, %v1268
      %v1270 = vpop.f32.mrf.mxu0
      %v1271 = vpop.f32.mrf.mxu0
      %v1272 = vadd.f32 0.0, %v1271
      %v1273 = vpop.f32.mrf.mxu0
      %1274 = vmatprep.mubr.bf16.mxu0 0
      %1275 = vmatmul.mubr.bf16.gmra.mxu0 %v1132
      %v1276 = vpop.f32.mrf.mxu0
      %v1277 = vadd.f32 0.0, %v1276
      %v1278 = vpop.f32.mrf.mxu0
      %v1279 = vpop.f32.mrf.mxu0
      %v1280 = vadd.f32 0.0, %v1279
      %v1281 = vpop.f32.mrf.mxu0
      %1282 = vmatprep.mubr.bf16.mxu0 0
      %1283 = vmatmul.mubr.bf16.gmra.mxu0 %v1135
      %v1284 = vpop.f32.mrf.mxu0
      %v1285 = vadd.f32 0.0, %v1284
      %v1286 = vpop.f32.mrf.mxu0
      %v1287 = vpop.f32.mrf.mxu0
      %v1288 = vadd.f32 0.0, %v1287
      %v1289 = vpop.f32.mrf.mxu0
      %1290 = vmatprep.mubr.bf16.mxu0 0
      %1291 = vmatmul.mubr.bf16.gmra.mxu0 %v1138
      %v1292 = vpop.f32.mrf.mxu0
      %v1293 = vadd.f32 0.0, %v1292
      %v1294 = vpop.f32.mrf.mxu0
      %v1295 = vpop.f32.mrf.mxu0
      %v1296 = vadd.f32 0.0, %v1295
      %v1297 = vpop.f32.mrf.mxu0
      %1298 = vmatprep.mubr.bf16.mxu0 0
      %1299 = vmatmul.mubr.bf16.gmra.mxu0 %v1141
      %v1300 = vpop.f32.mrf.mxu0
      %v1301 = vadd.f32 0.0, %v1300
      %v1302 = vpop.f32.mrf.mxu0
      %v1303 = vpop.f32.mrf.mxu0
      %v1304 = vadd.f32 0.0, %v1303
      %v1305 = vpop.f32.mrf.mxu0
      %1306 = vdwg.mxu0
      %v1307 = vadd.f32 %v848, %v1181
      %v1308 = vadd.f32 %v851, %v1184
      %v1309 = vadd.f32 %v856, %v1189
      %v1310 = vadd.f32 %v859, %v1192
      %v1311 = vadd.f32 %v864, %v1197
      %v1312 = vadd.f32 %v867, %v1200
      %v1313 = vadd.f32 %v872, %v1205
      %v1314 = vadd.f32 %v875, %v1208
      %v1315 = vadd.f32 %v880, %v1213
      %v1316 = vadd.f32 %v883, %v1216
      %v1317 = vadd.f32 %v888, %v1221
      %v1318 = vadd.f32 %v891, %v1224
      %v1319 = vadd.f32 %v896, %v1229
      %v1320 = vadd.f32 %v899, %v1232
      %v1321 = vadd.f32 %v904, %v1237
      %v1322 = vadd.f32 %v907, %v1240
      %v1323 = vadd.f32 %v912, %v1245
      %v1324 = vadd.f32 %v915, %v1248
      %v1325 = vadd.f32 %v920, %v1253
      %v1326 = vadd.f32 %v923, %v1256
      %v1327 = vadd.f32 %v928, %v1261
      %v1328 = vadd.f32 %v931, %v1264
      %v1329 = vadd.f32 %v936, %v1269
      %v1330 = vadd.f32 %v939, %v1272
      %v1331 = vadd.f32 %v944, %v1277
      %v1332 = vadd.f32 %v947, %v1280
      %v1333 = vadd.f32 %v952, %v1285
      %v1334 = vadd.f32 %v955, %v1288
      %v1335 = vadd.f32 %v960, %v1293
      %v1336 = vadd.f32 %v963, %v1296
      %v1337 = vadd.f32 %v968, %v1301
      %v1338 = vadd.f32 %v971, %v1304
      %v1339 = vld [vmem:[%s291] sm:$0x7]
      %v1340 = vld [vmem:[%s298] sm:$0x3]
      %vm1341 = vcmask 130048
      %v1342 = vsel %vm1341, %v1307, 0.0
      %v1343 = vsel %vm1341, %v1308, 0.0
      %v1344 = vadd.f32 %v1342, %v1343
      %v1345 = vsel %vm1341, %v1309, 0.0
      %v1346 = vadd.f32 %v1344, %v1345
      %v1347 = vsel %vm1341, %v1310, 0.0
      %v1348 = vadd.f32 %v1346, %v1347
      %v1349 = vsel %vm1341, %v1311, 0.0
      %v1350 = vadd.f32 %v1348, %v1349
      %v1351 = vsel %vm1341, %v1312, 0.0
      %v1352 = vadd.f32 %v1350, %v1351
      %v1353 = vsel %vm1341, %v1313, 0.0
      %v1354 = vadd.f32 %v1352, %v1353
      %v1355 = vsel %vm1341, %v1314, 0.0
      %v1356 = vadd.f32 %v1354, %v1355
      %v1357 = vsel %vm1341, %v1315, 0.0
      %v1358 = vadd.f32 %v1356, %v1357
      %v1359 = vsel %vm1341, %v1316, 0.0
      %v1360 = vadd.f32 %v1358, %v1359
      %v1361 = vsel %vm1341, %v1317, 0.0
      %v1362 = vadd.f32 %v1360, %v1361
      %v1363 = vsel %vm1341, %v1318, 0.0
      %v1364 = vadd.f32 %v1362, %v1363
      %v1365 = vsel %vm1341, %v1319, 0.0
      %v1366 = vadd.f32 %v1364, %v1365
      %v1367 = vsel %vm1341, %v1320, 0.0
      %v1368 = vadd.f32 %v1366, %v1367
      %v1369 = vsel %vm1341, %v1321, 0.0
      %v1370 = vadd.f32 %v1368, %v1369
      %v1371 = vsel %vm1341, %v1322, 0.0
      %v1372 = vadd.f32 %v1370, %v1371
      %v1373 = vsel %vm1341, %v1323, 0.0
      %v1374 = vadd.f32 %v1372, %v1373
      %v1375 = vsel %vm1341, %v1324, 0.0
      %v1376 = vadd.f32 %v1374, %v1375
      %v1377 = vsel %vm1341, %v1325, 0.0
      %v1378 = vadd.f32 %v1376, %v1377
      %v1379 = vsel %vm1341, %v1326, 0.0
      %v1380 = vadd.f32 %v1378, %v1379
      %v1381 = vsel %vm1341, %v1327, 0.0
      %v1382 = vadd.f32 %v1380, %v1381
      %v1383 = vsel %vm1341, %v1328, 0.0
      %v1384 = vadd.f32 %v1382, %v1383
      %v1385 = vsel %vm1341, %v1329, 0.0
      %v1386 = vadd.f32 %v1384, %v1385
      %v1387 = vsel %vm1341, %v1330, 0.0
      %v1388 = vadd.f32 %v1386, %v1387
      %v1389 = vsel %vm1341, %v1331, 0.0
      %v1390 = vadd.f32 %v1388, %v1389
      %v1391 = vsel %vm1341, %v1332, 0.0
      %v1392 = vadd.f32 %v1390, %v1391
      %v1393 = vsel %vm1341, %v1333, 0.0
      %v1394 = vadd.f32 %v1392, %v1393
      %v1395 = vsel %vm1341, %v1334, 0.0
      %v1396 = vadd.f32 %v1394, %v1395
      %v1397 = vsel %vm1341, %v1335, 0.0
      %v1398 = vadd.f32 %v1396, %v1397
      %v1399 = vsel %vm1341, %v1336, 0.0
      %v1400 = vadd.f32 %v1398, %v1399
      %v1401 = vsel %vm1341, %v1337, 0.0
      %v1402 = vadd.f32 %v1400, %v1401
      %v1403 = vsel %vm1341, %v1338, 0.0
      %v1404 = vadd.f32 %v1402, %v1403
      %v1405 = vrot.slane %v1404, 4
      %v1406 = vadd.f32 %v1404, %v1405
      %v1407 = vrot.slane %v1406, 2
      %v1408 = vadd.f32 %v1406, %v1407
      %v1409 = vrot.slane %v1408, 1
      %v1410 = vadd.f32 %v1408, %v1409
      %v1411 = vmul.f32 %v1307, %v1307
      %v1412 = vmul.f32 %v1308, %v1308
      %v1413 = vmul.f32 %v1309, %v1309
      %v1414 = vmul.f32 %v1310, %v1310
      %v1415 = vmul.f32 %v1311, %v1311
      %v1416 = vmul.f32 %v1312, %v1312
      %v1417 = vmul.f32 %v1313, %v1313
      %v1418 = vmul.f32 %v1314, %v1314
      %v1419 = vmul.f32 %v1315, %v1315
      %v1420 = vmul.f32 %v1316, %v1316
      %v1421 = vmul.f32 %v1317, %v1317
      %v1422 = vmul.f32 %v1318, %v1318
      %v1423 = vmul.f32 %v1319, %v1319
      %v1424 = vmul.f32 %v1320, %v1320
      %v1425 = vmul.f32 %v1321, %v1321
      %v1426 = vmul.f32 %v1322, %v1322
      %v1427 = vmul.f32 %v1323, %v1323
      %v1428 = vmul.f32 %v1324, %v1324
      %v1429 = vmul.f32 %v1325, %v1325
      %v1430 = vmul.f32 %v1326, %v1326
      %v1431 = vmul.f32 %v1327, %v1327
      %v1432 = vmul.f32 %v1328, %v1328
      %v1433 = vmul.f32 %v1329, %v1329
      %v1434 = vmul.f32 %v1330, %v1330
      %v1435 = vmul.f32 %v1331, %v1331
      %v1436 = vmul.f32 %v1332, %v1332
      %v1437 = vmul.f32 %v1333, %v1333
      %v1438 = vmul.f32 %v1334, %v1334
      %v1439 = vmul.f32 %v1335, %v1335
      %v1440 = vmul.f32 %v1336, %v1336
      %v1441 = vmul.f32 %v1337, %v1337
      %v1442 = vmul.f32 %v1338, %v1338
      %v1443 = vsel %vm1341, %v1411, 0.0
      %v1444 = vsel %vm1341, %v1412, 0.0
      %v1445 = vadd.f32 %v1443, %v1444
      %v1446 = vsel %vm1341, %v1413, 0.0
      %v1447 = vadd.f32 %v1445, %v1446
      %v1448 = vsel %vm1341, %v1414, 0.0
      %v1449 = vadd.f32 %v1447, %v1448
      %v1450 = vsel %vm1341, %v1415, 0.0
      %v1451 = vadd.f32 %v1449, %v1450
      %v1452 = vsel %vm1341, %v1416, 0.0
      %v1453 = vadd.f32 %v1451, %v1452
      %v1454 = vsel %vm1341, %v1417, 0.0
      %v1455 = vadd.f32 %v1453, %v1454
      %v1456 = vsel %vm1341, %v1418, 0.0
      %v1457 = vadd.f32 %v1455, %v1456
      %v1458 = vsel %vm1341, %v1419, 0.0
      %v1459 = vadd.f32 %v1457, %v1458
      %v1460 = vsel %vm1341, %v1420, 0.0
      %v1461 = vadd.f32 %v1459, %v1460
      %v1462 = vsel %vm1341, %v1421, 0.0
      %v1463 = vadd.f32 %v1461, %v1462
      %v1464 = vsel %vm1341, %v1422, 0.0
      %v1465 = vadd.f32 %v1463, %v1464
      %v1466 = vsel %vm1341, %v1423, 0.0
      %v1467 = vadd.f32 %v1465, %v1466
      %v1468 = vsel %vm1341, %v1424, 0.0
      %v1469 = vadd.f32 %v1467, %v1468
      %v1470 = vsel %vm1341, %v1425, 0.0
      %v1471 = vadd.f32 %v1469, %v1470
      %v1472 = vsel %vm1341, %v1426, 0.0
      %v1473 = vadd.f32 %v1471, %v1472
      %v1474 = vsel %vm1341, %v1427, 0.0
      %v1475 = vadd.f32 %v1473, %v1474
      %v1476 = vsel %vm1341, %v1428, 0.0
      %v1477 = vadd.f32 %v1475, %v1476
      %v1478 = vsel %vm1341, %v1429, 0.0
      %v1479 = vadd.f32 %v1477, %v1478
      %v1480 = vsel %vm1341, %v1430, 0.0
      %v1481 = vadd.f32 %v1479, %v1480
      %v1482 = vsel %vm1341, %v1431, 0.0
      %v1483 = vadd.f32 %v1481, %v1482
      %v1484 = vsel %vm1341, %v1432, 0.0
      %v1485 = vadd.f32 %v1483, %v1484
      %v1486 = vsel %vm1341, %v1433, 0.0
      %v1487 = vadd.f32 %v1485, %v1486
      %v1488 = vsel %vm1341, %v1434, 0.0
      %v1489 = vadd.f32 %v1487, %v1488
      %v1490 = vsel %vm1341, %v1435, 0.0
      %v1491 = vadd.f32 %v1489, %v1490
      %v1492 = vsel %vm1341, %v1436, 0.0
      %v1493 = vadd.f32 %v1491, %v1492
      %v1494 = vsel %vm1341, %v1437, 0.0
      %v1495 = vadd.f32 %v1493, %v1494
      %v1496 = vsel %vm1341, %v1438, 0.0
      %v1497 = vadd.f32 %v1495, %v1496
      %v1498 = vsel %vm1341, %v1439, 0.0
      %v1499 = vadd.f32 %v1497, %v1498
      %v1500 = vsel %vm1341, %v1440, 0.0
      %v1501 = vadd.f32 %v1499, %v1500
      %v1502 = vsel %vm1341, %v1441, 0.0
      %v1503 = vadd.f32 %v1501, %v1502
      %v1504 = vsel %vm1341, %v1442, 0.0
      %v1505 = vadd.f32 %v1503, %v1504
      %v1506 = vrot.slane %v1505, 4
      %v1507 = vadd.f32 %v1505, %v1506
      %v1508 = vrot.slane %v1507, 2
      %v1509 = vadd.f32 %v1507, %v1508
      %v1510 = vrot.slane %v1509, 1
      %v1511 = vadd.f32 %v1509, %v1510
      %v1512 = vmul.f32 %v1339, %v1410
      %v1513 = vmul.f32 %v1512, 2.0
      %v1514 = vadd.f32 %v1511, %v1513
      %v1515 = vld [vmem:[%s4] sm:$0xff]
      %v1516 = vld [vmem:[%s4 + $0x8] sm:$0xff]
      %v1518 = vsel %vm1341, %v1410, 0
      %1520 = vmatprep.subr.mxu0 0.0
      %1521 = vmatpush1.msra.mxu0 0.0
      %1522 = vmatprep.subr.mxu0 0.0
      %1523 = vmatpush1.msra.mxu0 0.0
      %1524 = vmatprep.subr.mxu0 0.0
      %1525 = vmatpush1.msra.mxu0 0.0
      %1526 = vmatprep.subr.mxu0 0.0
      %1527 = vmatpush1.msra.mxu0 0.0
      %1528 = vmatprep.subr.mxu0 0.0
      %1529 = vmatpush1.msra.mxu0 0.0
      %1530 = vmatprep.subr.mxu0 0.0
      %1531 = vmatpush1.msra.mxu0 0.0
      %1532 = vmatprep.subr.mxu0 0.0
      %1533 = vmatpush1.msra.mxu0 0.0
      %1534 = vmatprep.subr.mxu0 0.0
      %1535 = vmatpush1.msra.mxu0 0.0
      %1536 = vmatprep.subr.mxu0 0.0
      %1537 = vmatpush1.msra.mxu0 0.0
      %1538 = vmatprep.subr.mxu0 0.0
      %1539 = vmatpush1.msra.mxu0 0.0
      %1540 = vmatprep.subr.mxu0 0.0
      %1541 = vmatpush1.msra.mxu0 0.0
      %1542 = vmatprep.subr.mxu0 0.0
      %1543 = vmatpush1.msra.mxu0 0.0
      %1544 = vmatprep.subr.mxu0 0.0
      %1545 = vmatpush1.msra.mxu0 0.0
      %1546 = vmatprep.subr.mxu0 0.0
      %1547 = vmatpush1.msra.mxu0 0.0
      %1548 = vmatprep.subr.mxu0 0.0
      %v1549 = vand.u32 %v1516, 4294901760
      %1550 = vmatpush1.msra.mxu0 %v1549
      %1551 = vmatprep.subr.mxu0 0.0
      %v1552 = vand.u32 %v1515, 4294901760
      %1553 = vmatpush1.msra.mxu0 %v1552
      %1554 = vmatprep.subr.mxu0 0.0
      %1555 = vmatpush2.msra.mxu0 0.0
      %1556 = vmatprep.subr.mxu0 0.0
      %1557 = vmatpush2.msra.mxu0 0.0
      %1558 = vmatprep.subr.mxu0 0.0
      %1559 = vmatpush2.msra.mxu0 0.0
      %1560 = vmatprep.subr.mxu0 0.0
      %1561 = vmatpush2.msra.mxu0 0.0
      %1562 = vmatprep.subr.mxu0 0.0
      %1563 = vmatpush2.msra.mxu0 0.0
      %1564 = vmatprep.subr.mxu0 0.0
      %1565 = vmatpush2.msra.mxu0 0.0
      %1566 = vmatprep.subr.mxu0 0.0
      %1567 = vmatpush2.msra.mxu0 0.0
      %1568 = vmatprep.subr.mxu0 0.0
      %1569 = vmatpush2.msra.mxu0 0.0
      %1570 = vmatprep.subr.mxu0 0.0
      %1571 = vmatpush2.msra.mxu0 0.0
      %1572 = vmatprep.subr.mxu0 0.0
      %1573 = vmatpush2.msra.mxu0 0.0
      %1574 = vmatprep.subr.mxu0 0.0
      %1575 = vmatpush2.msra.mxu0 0.0
      %1576 = vmatprep.subr.mxu0 0.0
      %1577 = vmatpush2.msra.mxu0 0.0
      %1578 = vmatprep.subr.mxu0 0.0
      %1579 = vmatpush2.msra.mxu0 0.0
      %1580 = vmatprep.subr.mxu0 0.0
      %1581 = vmatpush2.msra.mxu0 0.0
      %1582 = vmatprep.subr.mxu0 0.0
      %1583 = vmatpush2.msra.mxu0 0.0
      %1584 = vmatprep.subr.mxu0 0.0
      %1585 = vmatpush2.msra.mxu0 0.0
      %1586 = vmatprep.mubr.f32.mxu0 0.0
      %v1587 = vand.u32 %v1518, 4294901760
      %v1588 = vsub.f32 %v1518, %v1587
      %v1589 = vand.u32 %v1588, 4294901760
      %v1590 = vsub.f32 %v1588, %v1589
      %v1591 = vand.u32 %v1590, 4294901760
      %1592 = vmatmul.mubr.f32.gmra.mxu0 %v1591
      %v1593 = vpop.f32.mrf.mxu0
      %v1594 = vadd.f32 0.0, %v1593
      %v1595 = vpop.f32.mrf.mxu0
      %1596 = vdwg.mxu0
      %1597 = vmatprep.subr.mxu0 0.0
      %1598 = vmatpush1.msra.mxu0 0.0
      %1599 = vmatprep.subr.mxu0 0.0
      %1600 = vmatpush1.msra.mxu0 0.0
      %1601 = vmatprep.subr.mxu0 0.0
      %1602 = vmatpush1.msra.mxu0 0.0
      %1603 = vmatprep.subr.mxu0 0.0
      %1604 = vmatpush1.msra.mxu0 0.0
      %1605 = vmatprep.subr.mxu0 0.0
      %1606 = vmatpush1.msra.mxu0 0.0
      %1607 = vmatprep.subr.mxu0 0.0
      %1608 = vmatpush1.msra.mxu0 0.0
      %1609 = vmatprep.subr.mxu0 0.0
      %1610 = vmatpush1.msra.mxu0 0.0
      %1611 = vmatprep.subr.mxu0 0.0
      %1612 = vmatpush1.msra.mxu0 0.0
      %1613 = vmatprep.subr.mxu0 0.0
      %1614 = vmatpush1.msra.mxu0 0.0
      %1615 = vmatprep.subr.mxu0 0.0
      %1616 = vmatpush1.msra.mxu0 0.0
      %1617 = vmatprep.subr.mxu0 0.0
      %1618 = vmatpush1.msra.mxu0 0.0
      %1619 = vmatprep.subr.mxu0 0.0
      %1620 = vmatpush1.msra.mxu0 0.0
      %1621 = vmatprep.subr.mxu0 0.0
      %1622 = vmatpush1.msra.mxu0 0.0
      %1623 = vmatprep.subr.mxu0 0.0
      %1624 = vmatpush1.msra.mxu0 0.0
      %1625 = vmatprep.subr.mxu0 0.0
      %v1626 = vand.u32 %v1516, 4294901760
      %v1627 = vsub.f32 %v1516, %v1626
      %v1628 = vand.u32 %v1627, 4294901760
      %v1629 = vsub.f32 %v1627, %v1628
      %v1630 = vand.u32 %v1629, 4294901760
      %1631 = vmatpush1.msra.mxu0 %v1630
      %1632 = vmatprep.subr.mxu0 0.0
      %v1633 = vand.u32 %v1515, 4294901760
      %v1634 = vsub.f32 %v1515, %v1633
      %v1635 = vand.u32 %v1634, 4294901760
      %v1636 = vsub.f32 %v1634, %v1635
      %v1637 = vand.u32 %v1636, 4294901760
      %1638 = vmatpush1.msra.mxu0 %v1637
      %1639 = vmatprep.subr.mxu0 0.0
      %1640 = vmatpush2.msra.mxu0 0.0
      %1641 = vmatprep.subr.mxu0 0.0
      %1642 = vmatpush2.msra.mxu0 0.0
      %1643 = vmatprep.subr.mxu0 0.0
      %1644 = vmatpush2.msra.mxu0 0.0
      %1645 = vmatprep.subr.mxu0 0.0
      %1646 = vmatpush2.msra.mxu0 0.0
      %1647 = vmatprep.subr.mxu0 0.0
      %1648 = vmatpush2.msra.mxu0 0.0
      %1649 = vmatprep.subr.mxu0 0.0
      %1650 = vmatpush2.msra.mxu0 0.0
      %1651 = vmatprep.subr.mxu0 0.0
      %1652 = vmatpush2.msra.mxu0 0.0
      %1653 = vmatprep.subr.mxu0 0.0
      %1654 = vmatpush2.msra.mxu0 0.0
      %1655 = vmatprep.subr.mxu0 0.0
      %1656 = vmatpush2.msra.mxu0 0.0
      %1657 = vmatprep.subr.mxu0 0.0
      %1658 = vmatpush2.msra.mxu0 0.0
      %1659 = vmatprep.subr.mxu0 0.0
      %1660 = vmatpush2.msra.mxu0 0.0
      %1661 = vmatprep.subr.mxu0 0.0
      %1662 = vmatpush2.msra.mxu0 0.0
      %1663 = vmatprep.subr.mxu0 0.0
      %1664 = vmatpush2.msra.mxu0 0.0
      %1665 = vmatprep.subr.mxu0 0.0
      %1666 = vmatpush2.msra.mxu0 0.0
      %1667 = vmatprep.subr.mxu0 0.0
      %1668 = vmatpush2.msra.mxu0 0.0
      %1669 = vmatprep.subr.mxu0 0.0
      %1670 = vmatpush2.msra.mxu0 0.0
      %1671 = vmatprep.mubr.f32.mxu0 0.0
      %v1672 = vand.u32 %v1518, 4294901760
      %1673 = vmatmul.mubr.f32.gmra.mxu0 %v1672
      %v1674 = vpop.f32.mrf.mxu0
      %v1675 = vadd.f32 %v1594, %v1674
      %v1676 = vpop.f32.mrf.mxu0
      %1677 = vdwg.mxu0
      %1678 = vmatprep.subr.mxu0 0.0
      %1679 = vmatpush1.msra.mxu0 0.0
      %1680 = vmatprep.subr.mxu0 0.0
      %1681 = vmatpush1.msra.mxu0 0.0
      %1682 = vmatprep.subr.mxu0 0.0
      %1683 = vmatpush1.msra.mxu0 0.0
      %1684 = vmatprep.subr.mxu0 0.0
      %1685 = vmatpush1.msra.mxu0 0.0
      %1686 = vmatprep.subr.mxu0 0.0
      %1687 = vmatpush1.msra.mxu0 0.0
      %1688 = vmatprep.subr.mxu0 0.0
      %1689 = vmatpush1.msra.mxu0 0.0
      %1690 = vmatprep.subr.mxu0 0.0
      %1691 = vmatpush1.msra.mxu0 0.0
      %1692 = vmatprep.subr.mxu0 0.0
      %1693 = vmatpush1.msra.mxu0 0.0
      %1694 = vmatprep.subr.mxu0 0.0
      %1695 = vmatpush1.msra.mxu0 0.0
      %1696 = vmatprep.subr.mxu0 0.0
      %1697 = vmatpush1.msra.mxu0 0.0
      %1698 = vmatprep.subr.mxu0 0.0
      %1699 = vmatpush1.msra.mxu0 0.0
      %1700 = vmatprep.subr.mxu0 0.0
      %1701 = vmatpush1.msra.mxu0 0.0
      %1702 = vmatprep.subr.mxu0 0.0
      %1703 = vmatpush1.msra.mxu0 0.0
      %1704 = vmatprep.subr.mxu0 0.0
      %1705 = vmatpush1.msra.mxu0 0.0
      %1706 = vmatprep.subr.mxu0 0.0
      %v1707 = vand.u32 %v1516, 4294901760
      %v1708 = vsub.f32 %v1516, %v1707
      %1709 = vmatpush1.msra.mxu0 %v1708
      %1710 = vmatprep.subr.mxu0 0.0
      %v1711 = vand.u32 %v1515, 4294901760
      %v1712 = vsub.f32 %v1515, %v1711
      %1713 = vmatpush1.msra.mxu0 %v1712
      %1714 = vmatprep.subr.mxu0 0.0
      %1715 = vmatpush2.msra.mxu0 0.0
      %1716 = vmatprep.subr.mxu0 0.0
      %1717 = vmatpush2.msra.mxu0 0.0
      %1718 = vmatprep.subr.mxu0 0.0
      %1719 = vmatpush2.msra.mxu0 0.0
      %1720 = vmatprep.subr.mxu0 0.0
      %1721 = vmatpush2.msra.mxu0 0.0
      %1722 = vmatprep.subr.mxu0 0.0
      %1723 = vmatpush2.msra.mxu0 0.0
      %1724 = vmatprep.subr.mxu0 0.0
      %1725 = vmatpush2.msra.mxu0 0.0
      %1726 = vmatprep.subr.mxu0 0.0
      %1727 = vmatpush2.msra.mxu0 0.0
      %1728 = vmatprep.subr.mxu0 0.0
      %1729 = vmatpush2.msra.mxu0 0.0
      %1730 = vmatprep.subr.mxu0 0.0
      %1731 = vmatpush2.msra.mxu0 0.0
      %1732 = vmatprep.subr.mxu0 0.0
      %1733 = vmatpush2.msra.mxu0 0.0
      %1734 = vmatprep.subr.mxu0 0.0
      %1735 = vmatpush2.msra.mxu0 0.0
      %1736 = vmatprep.subr.mxu0 0.0
      %1737 = vmatpush2.msra.mxu0 0.0
      %1738 = vmatprep.subr.mxu0 0.0
      %1739 = vmatpush2.msra.mxu0 0.0
      %1740 = vmatprep.subr.mxu0 0.0
      %1741 = vmatpush2.msra.mxu0 0.0
      %1742 = vmatprep.subr.mxu0 0.0
      %1743 = vmatpush2.msra.mxu0 0.0
      %1744 = vmatprep.subr.mxu0 0.0
      %1745 = vmatpush2.msra.mxu0 0.0
      %1746 = vmatprep.mubr.f32.mxu0 0.0
      %v1747 = vand.u32 %v1518, 4294901760
      %v1748 = vsub.f32 %v1518, %v1747
      %1749 = vmatmul.mubr.f32.gmra.mxu0 %v1748
      %v1750 = vpop.f32.mrf.mxu0
      %v1751 = vadd.f32 %v1675, %v1750
      %v1752 = vpop.f32.mrf.mxu0
      %1753 = vdwg.mxu0
      %1754 = vmatprep.subr.mxu0 0.0
      %1755 = vmatpush1.msra.mxu0 0.0
      %1756 = vmatprep.subr.mxu0 0.0
      %1757 = vmatpush1.msra.mxu0 0.0
      %1758 = vmatprep.subr.mxu0 0.0
      %1759 = vmatpush1.msra.mxu0 0.0
      %1760 = vmatprep.subr.mxu0 0.0
      %1761 = vmatpush1.msra.mxu0 0.0
      %1762 = vmatprep.subr.mxu0 0.0
      %1763 = vmatpush1.msra.mxu0 0.0
      %1764 = vmatprep.subr.mxu0 0.0
      %1765 = vmatpush1.msra.mxu0 0.0
      %1766 = vmatprep.subr.mxu0 0.0
      %1767 = vmatpush1.msra.mxu0 0.0
      %1768 = vmatprep.subr.mxu0 0.0
      %1769 = vmatpush1.msra.mxu0 0.0
      %1770 = vmatprep.subr.mxu0 0.0
      %1771 = vmatpush1.msra.mxu0 0.0
      %1772 = vmatprep.subr.mxu0 0.0
      %1773 = vmatpush1.msra.mxu0 0.0
      %1774 = vmatprep.subr.mxu0 0.0
      %1775 = vmatpush1.msra.mxu0 0.0
      %1776 = vmatprep.subr.mxu0 0.0
      %1777 = vmatpush1.msra.mxu0 0.0
      %1778 = vmatprep.subr.mxu0 0.0
      %1779 = vmatpush1.msra.mxu0 0.0
      %1780 = vmatprep.subr.mxu0 0.0
      %1781 = vmatpush1.msra.mxu0 0.0
      %1782 = vmatprep.subr.mxu0 0.0
      %v1783 = vand.u32 %v1516, 4294901760
      %1784 = vmatpush1.msra.mxu0 %v1783
      %1785 = vmatprep.subr.mxu0 0.0
      %v1786 = vand.u32 %v1515, 4294901760
      %1787 = vmatpush1.msra.mxu0 %v1786
      %1788 = vmatprep.subr.mxu0 0.0
      %1789 = vmatpush2.msra.mxu0 0.0
      %1790 = vmatprep.subr.mxu0 0.0
      %1791 = vmatpush2.msra.mxu0 0.0
      %1792 = vmatprep.subr.mxu0 0.0
      %1793 = vmatpush2.msra.mxu0 0.0
      %1794 = vmatprep.subr.mxu0 0.0
      %1795 = vmatpush2.msra.mxu0 0.0
      %1796 = vmatprep.subr.mxu0 0.0
      %1797 = vmatpush2.msra.mxu0 0.0
      %1798 = vmatprep.subr.mxu0 0.0
      %1799 = vmatpush2.msra.mxu0 0.0
      %1800 = vmatprep.subr.mxu0 0.0
      %1801 = vmatpush2.msra.mxu0 0.0
      %1802 = vmatprep.subr.mxu0 0.0
      %1803 = vmatpush2.msra.mxu0 0.0
      %1804 = vmatprep.subr.mxu0 0.0
      %1805 = vmatpush2.msra.mxu0 0.0
      %1806 = vmatprep.subr.mxu0 0.0
      %1807 = vmatpush2.msra.mxu0 0.0
      %1808 = vmatprep.subr.mxu0 0.0
      %1809 = vmatpush2.msra.mxu0 0.0
      %1810 = vmatprep.subr.mxu0 0.0
      %1811 = vmatpush2.msra.mxu0 0.0
      %1812 = vmatprep.subr.mxu0 0.0
      %1813 = vmatpush2.msra.mxu0 0.0
      %1814 = vmatprep.subr.mxu0 0.0
      %1815 = vmatpush2.msra.mxu0 0.0
      %1816 = vmatprep.subr.mxu0 0.0
      %1817 = vmatpush2.msra.mxu0 0.0
      %1818 = vmatprep.subr.mxu0 0.0
      %1819 = vmatpush2.msra.mxu0 0.0
      %1820 = vmatprep.mubr.f32.mxu0 0.0
      %v1821 = vand.u32 %v1518, 4294901760
      %v1822 = vsub.f32 %v1518, %v1821
      %v1823 = vand.u32 %v1822, 4294901760
      %1824 = vmatmul.mubr.f32.gmra.mxu0 %v1823
      %v1825 = vpop.f32.mrf.mxu0
      %v1826 = vadd.f32 %v1751, %v1825
      %v1827 = vpop.f32.mrf.mxu0
      %1828 = vdwg.mxu0
      %1829 = vmatprep.subr.mxu0 0.0
      %1830 = vmatpush1.msra.mxu0 0.0
      %1831 = vmatprep.subr.mxu0 0.0
      %1832 = vmatpush1.msra.mxu0 0.0
      %1833 = vmatprep.subr.mxu0 0.0
      %1834 = vmatpush1.msra.mxu0 0.0
      %1835 = vmatprep.subr.mxu0 0.0
      %1836 = vmatpush1.msra.mxu0 0.0
      %1837 = vmatprep.subr.mxu0 0.0
      %1838 = vmatpush1.msra.mxu0 0.0
      %1839 = vmatprep.subr.mxu0 0.0
      %1840 = vmatpush1.msra.mxu0 0.0
      %1841 = vmatprep.subr.mxu0 0.0
      %1842 = vmatpush1.msra.mxu0 0.0
      %1843 = vmatprep.subr.mxu0 0.0
      %1844 = vmatpush1.msra.mxu0 0.0
      %1845 = vmatprep.subr.mxu0 0.0
      %1846 = vmatpush1.msra.mxu0 0.0
      %1847 = vmatprep.subr.mxu0 0.0
      %1848 = vmatpush1.msra.mxu0 0.0
      %1849 = vmatprep.subr.mxu0 0.0
      %1850 = vmatpush1.msra.mxu0 0.0
      %1851 = vmatprep.subr.mxu0 0.0
      %1852 = vmatpush1.msra.mxu0 0.0
      %1853 = vmatprep.subr.mxu0 0.0
      %1854 = vmatpush1.msra.mxu0 0.0
      %1855 = vmatprep.subr.mxu0 0.0
      %1856 = vmatpush1.msra.mxu0 0.0
      %1857 = vmatprep.subr.mxu0 0.0
      %v1858 = vand.u32 %v1516, 4294901760
      %v1859 = vsub.f32 %v1516, %v1858
      %v1860 = vand.u32 %v1859, 4294901760
      %1861 = vmatpush1.msra.mxu0 %v1860
      %1862 = vmatprep.subr.mxu0 0.0
      %v1863 = vand.u32 %v1515, 4294901760
      %v1864 = vsub.f32 %v1515, %v1863
      %v1865 = vand.u32 %v1864, 4294901760
      %1866 = vmatpush1.msra.mxu0 %v1865
      %1867 = vmatprep.subr.mxu0 0.0
      %1868 = vmatpush2.msra.mxu0 0.0
      %1869 = vmatprep.subr.mxu0 0.0
      %1870 = vmatpush2.msra.mxu0 0.0
      %1871 = vmatprep.subr.mxu0 0.0
      %1872 = vmatpush2.msra.mxu0 0.0
      %1873 = vmatprep.subr.mxu0 0.0
      %1874 = vmatpush2.msra.mxu0 0.0
      %1875 = vmatprep.subr.mxu0 0.0
      %1876 = vmatpush2.msra.mxu0 0.0
      %1877 = vmatprep.subr.mxu0 0.0
      %1878 = vmatpush2.msra.mxu0 0.0
      %1879 = vmatprep.subr.mxu0 0.0
      %1880 = vmatpush2.msra.mxu0 0.0
      %1881 = vmatprep.subr.mxu0 0.0
      %1882 = vmatpush2.msra.mxu0 0.0
      %1883 = vmatprep.subr.mxu0 0.0
      %1884 = vmatpush2.msra.mxu0 0.0
      %1885 = vmatprep.subr.mxu0 0.0
      %1886 = vmatpush2.msra.mxu0 0.0
      %1887 = vmatprep.subr.mxu0 0.0
      %1888 = vmatpush2.msra.mxu0 0.0
      %1889 = vmatprep.subr.mxu0 0.0
      %1890 = vmatpush2.msra.mxu0 0.0
      %1891 = vmatprep.subr.mxu0 0.0
      %1892 = vmatpush2.msra.mxu0 0.0
      %1893 = vmatprep.subr.mxu0 0.0
      %1894 = vmatpush2.msra.mxu0 0.0
      %1895 = vmatprep.subr.mxu0 0.0
      %1896 = vmatpush2.msra.mxu0 0.0
      %1897 = vmatprep.subr.mxu0 0.0
      %1898 = vmatpush2.msra.mxu0 0.0
      %1899 = vmatprep.mubr.f32.mxu0 0.0
      %v1900 = vand.u32 %v1518, 4294901760
      %1901 = vmatmul.mubr.f32.gmra.mxu0 %v1900
      %v1902 = vpop.f32.mrf.mxu0
      %v1903 = vadd.f32 %v1826, %v1902
      %v1904 = vpop.f32.mrf.mxu0
      %1905 = vdwg.mxu0
      %1906 = vmatprep.subr.mxu0 0.0
      %1907 = vmatpush1.msra.mxu0 0.0
      %1908 = vmatprep.subr.mxu0 0.0
      %1909 = vmatpush1.msra.mxu0 0.0
      %1910 = vmatprep.subr.mxu0 0.0
      %1911 = vmatpush1.msra.mxu0 0.0
      %1912 = vmatprep.subr.mxu0 0.0
      %1913 = vmatpush1.msra.mxu0 0.0
      %1914 = vmatprep.subr.mxu0 0.0
      %1915 = vmatpush1.msra.mxu0 0.0
      %1916 = vmatprep.subr.mxu0 0.0
      %1917 = vmatpush1.msra.mxu0 0.0
      %1918 = vmatprep.subr.mxu0 0.0
      %1919 = vmatpush1.msra.mxu0 0.0
      %1920 = vmatprep.subr.mxu0 0.0
      %1921 = vmatpush1.msra.mxu0 0.0
      %1922 = vmatprep.subr.mxu0 0.0
      %1923 = vmatpush1.msra.mxu0 0.0
      %1924 = vmatprep.subr.mxu0 0.0
      %1925 = vmatpush1.msra.mxu0 0.0
      %1926 = vmatprep.subr.mxu0 0.0
      %1927 = vmatpush1.msra.mxu0 0.0
      %1928 = vmatprep.subr.mxu0 0.0
      %1929 = vmatpush1.msra.mxu0 0.0
      %1930 = vmatprep.subr.mxu0 0.0
      %1931 = vmatpush1.msra.mxu0 0.0
      %1932 = vmatprep.subr.mxu0 0.0
      %1933 = vmatpush1.msra.mxu0 0.0
      %1934 = vmatprep.subr.mxu0 0.0
      %v1935 = vand.u32 %v1516, 4294901760
      %1936 = vmatpush1.msra.mxu0 %v1935
      %1937 = vmatprep.subr.mxu0 0.0
      %v1938 = vand.u32 %v1515, 4294901760
      %1939 = vmatpush1.msra.mxu0 %v1938
      %1940 = vmatprep.subr.mxu0 0.0
      %1941 = vmatpush2.msra.mxu0 0.0
      %1942 = vmatprep.subr.mxu0 0.0
      %1943 = vmatpush2.msra.mxu0 0.0
      %1944 = vmatprep.subr.mxu0 0.0
      %1945 = vmatpush2.msra.mxu0 0.0
      %1946 = vmatprep.subr.mxu0 0.0
      %1947 = vmatpush2.msra.mxu0 0.0
      %1948 = vmatprep.subr.mxu0 0.0
      %1949 = vmatpush2.msra.mxu0 0.0
      %1950 = vmatprep.subr.mxu0 0.0
      %1951 = vmatpush2.msra.mxu0 0.0
      %1952 = vmatprep.subr.mxu0 0.0
      %1953 = vmatpush2.msra.mxu0 0.0
      %1954 = vmatprep.subr.mxu0 0.0
      %1955 = vmatpush2.msra.mxu0 0.0
      %1956 = vmatprep.subr.mxu0 0.0
      %1957 = vmatpush2.msra.mxu0 0.0
      %1958 = vmatprep.subr.mxu0 0.0
      %1959 = vmatpush2.msra.mxu0 0.0
      %1960 = vmatprep.subr.mxu0 0.0
      %1961 = vmatpush2.msra.mxu0 0.0
      %1962 = vmatprep.subr.mxu0 0.0
      %1963 = vmatpush2.msra.mxu0 0.0
      %1964 = vmatprep.subr.mxu0 0.0
      %1965 = vmatpush2.msra.mxu0 0.0
      %1966 = vmatprep.subr.mxu0 0.0
      %1967 = vmatpush2.msra.mxu0 0.0
      %1968 = vmatprep.subr.mxu0 0.0
      %1969 = vmatpush2.msra.mxu0 0.0
      %1970 = vmatprep.subr.mxu0 0.0
      %1971 = vmatpush2.msra.mxu0 0.0
      %1972 = vmatprep.mubr.f32.mxu0 0.0
      %v1973 = vand.u32 %v1518, 4294901760
      %1974 = vmatmul.mubr.f32.gmra.mxu0 %v1973
      %v1975 = vpop.f32.mrf.mxu0
      %v1976 = vadd.f32 %v1903, %v1975
      %v1977 = vpop.f32.mrf.mxu0
      %1978 = vdwg.mxu0
      %v1980 = vsel %vm1341, %v1514, 0
      %1982 = vmatprep.subr.mxu0 0.0
      %1983 = vmatpush1.msra.mxu0 0.0
      %1984 = vmatprep.subr.mxu0 0.0
      %1985 = vmatpush1.msra.mxu0 0.0
      %1986 = vmatprep.subr.mxu0 0.0
      %1987 = vmatpush1.msra.mxu0 0.0
      %1988 = vmatprep.subr.mxu0 0.0
      %1989 = vmatpush1.msra.mxu0 0.0
      %1990 = vmatprep.subr.mxu0 0.0
      %1991 = vmatpush1.msra.mxu0 0.0
      %1992 = vmatprep.subr.mxu0 0.0
      %1993 = vmatpush1.msra.mxu0 0.0
      %1994 = vmatprep.subr.mxu0 0.0
      %1995 = vmatpush1.msra.mxu0 0.0
      %1996 = vmatprep.subr.mxu0 0.0
      %1997 = vmatpush1.msra.mxu0 0.0
      %1998 = vmatprep.subr.mxu0 0.0
      %1999 = vmatpush1.msra.mxu0 0.0
      %2000 = vmatprep.subr.mxu0 0.0
      %2001 = vmatpush1.msra.mxu0 0.0
      %2002 = vmatprep.subr.mxu0 0.0
      %2003 = vmatpush1.msra.mxu0 0.0
      %2004 = vmatprep.subr.mxu0 0.0
      %2005 = vmatpush1.msra.mxu0 0.0
      %2006 = vmatprep.subr.mxu0 0.0
      %2007 = vmatpush1.msra.mxu0 0.0
      %2008 = vmatprep.subr.mxu0 0.0
      %2009 = vmatpush1.msra.mxu0 0.0
      %2010 = vmatprep.subr.mxu0 0.0
      %v2011 = vand.u32 %v1516, 4294901760
      %2012 = vmatpush1.msra.mxu0 %v2011
      %2013 = vmatprep.subr.mxu0 0.0
      %v2014 = vand.u32 %v1515, 4294901760
      %2015 = vmatpush1.msra.mxu0 %v2014
      %2016 = vmatprep.subr.mxu0 0.0
      %2017 = vmatpush2.msra.mxu0 0.0
      %2018 = vmatprep.subr.mxu0 0.0
      %2019 = vmatpush2.msra.mxu0 0.0
      %2020 = vmatprep.subr.mxu0 0.0
      %2021 = vmatpush2.msra.mxu0 0.0
      %2022 = vmatprep.subr.mxu0 0.0
      %2023 = vmatpush2.msra.mxu0 0.0
      %2024 = vmatprep.subr.mxu0 0.0
      %2025 = vmatpush2.msra.mxu0 0.0
      %2026 = vmatprep.subr.mxu0 0.0
      %2027 = vmatpush2.msra.mxu0 0.0
      %2028 = vmatprep.subr.mxu0 0.0
      %2029 = vmatpush2.msra.mxu0 0.0
      %2030 = vmatprep.subr.mxu0 0.0
      %2031 = vmatpush2.msra.mxu0 0.0
      %2032 = vmatprep.subr.mxu0 0.0
      %2033 = vmatpush2.msra.mxu0 0.0
      %2034 = vmatprep.subr.mxu0 0.0
      %2035 = vmatpush2.msra.mxu0 0.0
      %2036 = vmatprep.subr.mxu0 0.0
      %2037 = vmatpush2.msra.mxu0 0.0
      %2038 = vmatprep.subr.mxu0 0.0
      %2039 = vmatpush2.msra.mxu0 0.0
      %2040 = vmatprep.subr.mxu0 0.0
      %2041 = vmatpush2.msra.mxu0 0.0
      %2042 = vmatprep.subr.mxu0 0.0
      %2043 = vmatpush2.msra.mxu0 0.0
      %2044 = vmatprep.subr.mxu0 0.0
      %2045 = vmatpush2.msra.mxu0 0.0
      %2046 = vmatprep.subr.mxu0 0.0
      %2047 = vmatpush2.msra.mxu0 0.0
      %2048 = vmatprep.mubr.f32.mxu0 0.0
      %v2049 = vand.u32 %v1980, 4294901760
      %v2050 = vsub.f32 %v1980, %v2049
      %v2051 = vand.u32 %v2050, 4294901760
      %v2052 = vsub.f32 %v2050, %v2051
      %v2053 = vand.u32 %v2052, 4294901760
      %2054 = vmatmul.mubr.f32.gmra.mxu0 %v2053
      %v2055 = vpop.f32.mrf.mxu0
      %v2056 = vadd.f32 0.0, %v2055
      %v2057 = vpop.f32.mrf.mxu0
      %2058 = vdwg.mxu0
      %2059 = vmatprep.subr.mxu0 0.0
      %2060 = vmatpush1.msra.mxu0 0.0
      %2061 = vmatprep.subr.mxu0 0.0
      %2062 = vmatpush1.msra.mxu0 0.0
      %2063 = vmatprep.subr.mxu0 0.0
      %2064 = vmatpush1.msra.mxu0 0.0
      %2065 = vmatprep.subr.mxu0 0.0
      %2066 = vmatpush1.msra.mxu0 0.0
      %2067 = vmatprep.subr.mxu0 0.0
      %2068 = vmatpush1.msra.mxu0 0.0
      %2069 = vmatprep.subr.mxu0 0.0
      %2070 = vmatpush1.msra.mxu0 0.0
      %2071 = vmatprep.subr.mxu0 0.0
      %2072 = vmatpush1.msra.mxu0 0.0
      %2073 = vmatprep.subr.mxu0 0.0
      %2074 = vmatpush1.msra.mxu0 0.0
      %2075 = vmatprep.subr.mxu0 0.0
      %2076 = vmatpush1.msra.mxu0 0.0
      %2077 = vmatprep.subr.mxu0 0.0
      %2078 = vmatpush1.msra.mxu0 0.0
      %2079 = vmatprep.subr.mxu0 0.0
      %2080 = vmatpush1.msra.mxu0 0.0
      %2081 = vmatprep.subr.mxu0 0.0
      %2082 = vmatpush1.msra.mxu0 0.0
      %2083 = vmatprep.subr.mxu0 0.0
      %2084 = vmatpush1.msra.mxu0 0.0
      %2085 = vmatprep.subr.mxu0 0.0
      %2086 = vmatpush1.msra.mxu0 0.0
      %2087 = vmatprep.subr.mxu0 0.0
      %v2088 = vand.u32 %v1516, 4294901760
      %v2089 = vsub.f32 %v1516, %v2088
      %v2090 = vand.u32 %v2089, 4294901760
      %v2091 = vsub.f32 %v2089, %v2090
      %v2092 = vand.u32 %v2091, 4294901760
      %2093 = vmatpush1.msra.mxu0 %v2092
      %2094 = vmatprep.subr.mxu0 0.0
      %v2095 = vand.u32 %v1515, 4294901760
      %v2096 = vsub.f32 %v1515, %v2095
      %v2097 = vand.u32 %v2096, 4294901760
      %v2098 = vsub.f32 %v2096, %v2097
      %v2099 = vand.u32 %v2098, 4294901760
      %2100 = vmatpush1.msra.mxu0 %v2099
      %2101 = vmatprep.subr.mxu0 0.0
      %2102 = vmatpush2.msra.mxu0 0.0
      %2103 = vmatprep.subr.mxu0 0.0
      %2104 = vmatpush2.msra.mxu0 0.0
      %2105 = vmatprep.subr.mxu0 0.0
      %2106 = vmatpush2.msra.mxu0 0.0
      %2107 = vmatprep.subr.mxu0 0.0
      %2108 = vmatpush2.msra.mxu0 0.0
      %2109 = vmatprep.subr.mxu0 0.0
      %2110 = vmatpush2.msra.mxu0 0.0
      %2111 = vmatprep.subr.mxu0 0.0
      %2112 = vmatpush2.msra.mxu0 0.0
      %2113 = vmatprep.subr.mxu0 0.0
      %2114 = vmatpush2.msra.mxu0 0.0
      %2115 = vmatprep.subr.mxu0 0.0
      %2116 = vmatpush2.msra.mxu0 0.0
      %2117 = vmatprep.subr.mxu0 0.0
      %2118 = vmatpush2.msra.mxu0 0.0
      %2119 = vmatprep.subr.mxu0 0.0
      %2120 = vmatpush2.msra.mxu0 0.0
      %2121 = vmatprep.subr.mxu0 0.0
      %2122 = vmatpush2.msra.mxu0 0.0
      %2123 = vmatprep.subr.mxu0 0.0
      %2124 = vmatpush2.msra.mxu0 0.0
      %2125 = vmatprep.subr.mxu0 0.0
      %2126 = vmatpush2.msra.mxu0 0.0
      %2127 = vmatprep.subr.mxu0 0.0
      %2128 = vmatpush2.msra.mxu0 0.0
      %2129 = vmatprep.subr.mxu0 0.0
      %2130 = vmatpush2.msra.mxu0 0.0
      %2131 = vmatprep.subr.mxu0 0.0
      %2132 = vmatpush2.msra.mxu0 0.0
      %2133 = vmatprep.mubr.f32.mxu0 0.0
      %v2134 = vand.u32 %v1980, 4294901760
      %2135 = vmatmul.mubr.f32.gmra.mxu0 %v2134
      %v2136 = vpop.f32.mrf.mxu0
      %v2137 = vadd.f32 %v2056, %v2136
      %v2138 = vpop.f32.mrf.mxu0
      %2139 = vdwg.mxu0
      %2140 = vmatprep.subr.mxu0 0.0
      %2141 = vmatpush1.msra.mxu0 0.0
      %2142 = vmatprep.subr.mxu0 0.0
      %2143 = vmatpush1.msra.mxu0 0.0
      %2144 = vmatprep.subr.mxu0 0.0
      %2145 = vmatpush1.msra.mxu0 0.0
      %2146 = vmatprep.subr.mxu0 0.0
      %2147 = vmatpush1.msra.mxu0 0.0
      %2148 = vmatprep.subr.mxu0 0.0
      %2149 = vmatpush1.msra.mxu0 0.0
      %2150 = vmatprep.subr.mxu0 0.0
      %2151 = vmatpush1.msra.mxu0 0.0
      %2152 = vmatprep.subr.mxu0 0.0
      %2153 = vmatpush1.msra.mxu0 0.0
      %2154 = vmatprep.subr.mxu0 0.0
      %2155 = vmatpush1.msra.mxu0 0.0
      %2156 = vmatprep.subr.mxu0 0.0
      %2157 = vmatpush1.msra.mxu0 0.0
      %2158 = vmatprep.subr.mxu0 0.0
      %2159 = vmatpush1.msra.mxu0 0.0
      %2160 = vmatprep.subr.mxu0 0.0
      %2161 = vmatpush1.msra.mxu0 0.0
      %2162 = vmatprep.subr.mxu0 0.0
      %2163 = vmatpush1.msra.mxu0 0.0
      %2164 = vmatprep.subr.mxu0 0.0
      %2165 = vmatpush1.msra.mxu0 0.0
      %2166 = vmatprep.subr.mxu0 0.0
      %2167 = vmatpush1.msra.mxu0 0.0
      %2168 = vmatprep.subr.mxu0 0.0
      %v2169 = vand.u32 %v1516, 4294901760
      %v2170 = vsub.f32 %v1516, %v2169
      %2171 = vmatpush1.msra.mxu0 %v2170
      %2172 = vmatprep.subr.mxu0 0.0
      %v2173 = vand.u32 %v1515, 4294901760
      %v2174 = vsub.f32 %v1515, %v2173
      %2175 = vmatpush1.msra.mxu0 %v2174
      %2176 = vmatprep.subr.mxu0 0.0
      %2177 = vmatpush2.msra.mxu0 0.0
      %2178 = vmatprep.subr.mxu0 0.0
      %2179 = vmatpush2.msra.mxu0 0.0
      %2180 = vmatprep.subr.mxu0 0.0
      %2181 = vmatpush2.msra.mxu0 0.0
      %2182 = vmatprep.subr.mxu0 0.0
      %2183 = vmatpush2.msra.mxu0 0.0
      %2184 = vmatprep.subr.mxu0 0.0
      %2185 = vmatpush2.msra.mxu0 0.0
      %2186 = vmatprep.subr.mxu0 0.0
      %2187 = vmatpush2.msra.mxu0 0.0
      %2188 = vmatprep.subr.mxu0 0.0
      %2189 = vmatpush2.msra.mxu0 0.0
      %2190 = vmatprep.subr.mxu0 0.0
      %2191 = vmatpush2.msra.mxu0 0.0
      %2192 = vmatprep.subr.mxu0 0.0
      %2193 = vmatpush2.msra.mxu0 0.0
      %2194 = vmatprep.subr.mxu0 0.0
      %2195 = vmatpush2.msra.mxu0 0.0
      %2196 = vmatprep.subr.mxu0 0.0
      %2197 = vmatpush2.msra.mxu0 0.0
      %2198 = vmatprep.subr.mxu0 0.0
      %2199 = vmatpush2.msra.mxu0 0.0
      %2200 = vmatprep.subr.mxu0 0.0
      %2201 = vmatpush2.msra.mxu0 0.0
      %2202 = vmatprep.subr.mxu0 0.0
      %2203 = vmatpush2.msra.mxu0 0.0
      %2204 = vmatprep.subr.mxu0 0.0
      %2205 = vmatpush2.msra.mxu0 0.0
      %2206 = vmatprep.subr.mxu0 0.0
      %2207 = vmatpush2.msra.mxu0 0.0
      %2208 = vmatprep.mubr.f32.mxu0 0.0
      %v2209 = vand.u32 %v1980, 4294901760
      %v2210 = vsub.f32 %v1980, %v2209
      %2211 = vmatmul.mubr.f32.gmra.mxu0 %v2210
      %v2212 = vpop.f32.mrf.mxu0
      %v2213 = vadd.f32 %v2137, %v2212
      %v2214 = vpop.f32.mrf.mxu0
      %2215 = vdwg.mxu0
      %2216 = vmatprep.subr.mxu0 0.0
      %2217 = vmatpush1.msra.mxu0 0.0
      %2218 = vmatprep.subr.mxu0 0.0
      %2219 = vmatpush1.msra.mxu0 0.0
      %2220 = vmatprep.subr.mxu0 0.0
      %2221 = vmatpush1.msra.mxu0 0.0
      %2222 = vmatprep.subr.mxu0 0.0
      %2223 = vmatpush1.msra.mxu0 0.0
      %2224 = vmatprep.subr.mxu0 0.0
      %2225 = vmatpush1.msra.mxu0 0.0
      %2226 = vmatprep.subr.mxu0 0.0
      %2227 = vmatpush1.msra.mxu0 0.0
      %2228 = vmatprep.subr.mxu0 0.0
      %2229 = vmatpush1.msra.mxu0 0.0
      %2230 = vmatprep.subr.mxu0 0.0
      %2231 = vmatpush1.msra.mxu0 0.0
      %2232 = vmatprep.subr.mxu0 0.0
      %2233 = vmatpush1.msra.mxu0 0.0
      %2234 = vmatprep.subr.mxu0 0.0
      %2235 = vmatpush1.msra.mxu0 0.0
      %2236 = vmatprep.subr.mxu0 0.0
      %2237 = vmatpush1.msra.mxu0 0.0
      %2238 = vmatprep.subr.mxu0 0.0
      %2239 = vmatpush1.msra.mxu0 0.0
      %2240 = vmatprep.subr.mxu0 0.0
      %2241 = vmatpush1.msra.mxu0 0.0
      %2242 = vmatprep.subr.mxu0 0.0
      %2243 = vmatpush1.msra.mxu0 0.0
      %2244 = vmatprep.subr.mxu0 0.0
      %v2245 = vand.u32 %v1516, 4294901760
      %2246 = vmatpush1.msra.mxu0 %v2245
      %2247 = vmatprep.subr.mxu0 0.0
      %v2248 = vand.u32 %v1515, 4294901760
      %2249 = vmatpush1.msra.mxu0 %v2248
      %2250 = vmatprep.subr.mxu0 0.0
      %2251 = vmatpush2.msra.mxu0 0.0
      %2252 = vmatprep.subr.mxu0 0.0
      %2253 = vmatpush2.msra.mxu0 0.0
      %2254 = vmatprep.subr.mxu0 0.0
      %2255 = vmatpush2.msra.mxu0 0.0
      %2256 = vmatprep.subr.mxu0 0.0
      %2257 = vmatpush2.msra.mxu0 0.0
      %2258 = vmatprep.subr.mxu0 0.0
      %2259 = vmatpush2.msra.mxu0 0.0
      %2260 = vmatprep.subr.mxu0 0.0
      %2261 = vmatpush2.msra.mxu0 0.0
      %2262 = vmatprep.subr.mxu0 0.0
      %2263 = vmatpush2.msra.mxu0 0.0
      %2264 = vmatprep.subr.mxu0 0.0
      %2265 = vmatpush2.msra.mxu0 0.0
      %2266 = vmatprep.subr.mxu0 0.0
      %2267 = vmatpush2.msra.mxu0 0.0
      %2268 = vmatprep.subr.mxu0 0.0
      %2269 = vmatpush2.msra.mxu0 0.0
      %2270 = vmatprep.subr.mxu0 0.0
      %2271 = vmatpush2.msra.mxu0 0.0
      %2272 = vmatprep.subr.mxu0 0.0
      %2273 = vmatpush2.msra.mxu0 0.0
      %2274 = vmatprep.subr.mxu0 0.0
      %2275 = vmatpush2.msra.mxu0 0.0
      %2276 = vmatprep.subr.mxu0 0.0
      %2277 = vmatpush2.msra.mxu0 0.0
      %2278 = vmatprep.subr.mxu0 0.0
      %2279 = vmatpush2.msra.mxu0 0.0
      %2280 = vmatprep.subr.mxu0 0.0
      %2281 = vmatpush2.msra.mxu0 0.0
      %2282 = vmatprep.mubr.f32.mxu0 0.0
      %v2283 = vand.u32 %v1980, 4294901760
      %v2284 = vsub.f32 %v1980, %v2283
      %v2285 = vand.u32 %v2284, 4294901760
      %2286 = vmatmul.mubr.f32.gmra.mxu0 %v2285
      %v2287 = vpop.f32.mrf.mxu0
      %v2288 = vadd.f32 %v2213, %v2287
      %v2289 = vpop.f32.mrf.mxu0
      %2290 = vdwg.mxu0
      %2291 = vmatprep.subr.mxu0 0.0
      %2292 = vmatpush1.msra.mxu0 0.0
      %2293 = vmatprep.subr.mxu0 0.0
      %2294 = vmatpush1.msra.mxu0 0.0
      %2295 = vmatprep.subr.mxu0 0.0
      %2296 = vmatpush1.msra.mxu0 0.0
      %2297 = vmatprep.subr.mxu0 0.0
      %2298 = vmatpush1.msra.mxu0 0.0
      %2299 = vmatprep.subr.mxu0 0.0
      %2300 = vmatpush1.msra.mxu0 0.0
      %2301 = vmatprep.subr.mxu0 0.0
      %2302 = vmatpush1.msra.mxu0 0.0
      %2303 = vmatprep.subr.mxu0 0.0
      %2304 = vmatpush1.msra.mxu0 0.0
      %2305 = vmatprep.subr.mxu0 0.0
      %2306 = vmatpush1.msra.mxu0 0.0
      %2307 = vmatprep.subr.mxu0 0.0
      %2308 = vmatpush1.msra.mxu0 0.0
      %2309 = vmatprep.subr.mxu0 0.0
      %2310 = vmatpush1.msra.mxu0 0.0
      %2311 = vmatprep.subr.mxu0 0.0
      %2312 = vmatpush1.msra.mxu0 0.0
      %2313 = vmatprep.subr.mxu0 0.0
      %2314 = vmatpush1.msra.mxu0 0.0
      %2315 = vmatprep.subr.mxu0 0.0
      %2316 = vmatpush1.msra.mxu0 0.0
      %2317 = vmatprep.subr.mxu0 0.0
      %2318 = vmatpush1.msra.mxu0 0.0
      %2319 = vmatprep.subr.mxu0 0.0
      %v2320 = vand.u32 %v1516, 4294901760
      %v2321 = vsub.f32 %v1516, %v2320
      %v2322 = vand.u32 %v2321, 4294901760
      %2323 = vmatpush1.msra.mxu0 %v2322
      %2324 = vmatprep.subr.mxu0 0.0
      %v2325 = vand.u32 %v1515, 4294901760
      %v2326 = vsub.f32 %v1515, %v2325
      %v2327 = vand.u32 %v2326, 4294901760
      %2328 = vmatpush1.msra.mxu0 %v2327
      %2329 = vmatprep.subr.mxu0 0.0
      %2330 = vmatpush2.msra.mxu0 0.0
      %2331 = vmatprep.subr.mxu0 0.0
      %2332 = vmatpush2.msra.mxu0 0.0
      %2333 = vmatprep.subr.mxu0 0.0
      %2334 = vmatpush2.msra.mxu0 0.0
      %2335 = vmatprep.subr.mxu0 0.0
      %2336 = vmatpush2.msra.mxu0 0.0
      %2337 = vmatprep.subr.mxu0 0.0
      %2338 = vmatpush2.msra.mxu0 0.0
      %2339 = vmatprep.subr.mxu0 0.0
      %2340 = vmatpush2.msra.mxu0 0.0
      %2341 = vmatprep.subr.mxu0 0.0
      %2342 = vmatpush2.msra.mxu0 0.0
      %2343 = vmatprep.subr.mxu0 0.0
      %2344 = vmatpush2.msra.mxu0 0.0
      %2345 = vmatprep.subr.mxu0 0.0
      %2346 = vmatpush2.msra.mxu0 0.0
      %2347 = vmatprep.subr.mxu0 0.0
      %2348 = vmatpush2.msra.mxu0 0.0
      %2349 = vmatprep.subr.mxu0 0.0
      %2350 = vmatpush2.msra.mxu0 0.0
      %2351 = vmatprep.subr.mxu0 0.0
      %2352 = vmatpush2.msra.mxu0 0.0
      %2353 = vmatprep.subr.mxu0 0.0
      %2354 = vmatpush2.msra.mxu0 0.0
      %2355 = vmatprep.subr.mxu0 0.0
      %2356 = vmatpush2.msra.mxu0 0.0
      %2357 = vmatprep.subr.mxu0 0.0
      %2358 = vmatpush2.msra.mxu0 0.0
      %2359 = vmatprep.subr.mxu0 0.0
      %2360 = vmatpush2.msra.mxu0 0.0
      %2361 = vmatprep.mubr.f32.mxu0 0.0
      %v2362 = vand.u32 %v1980, 4294901760
      %2363 = vmatmul.mubr.f32.gmra.mxu0 %v2362
      %v2364 = vpop.f32.mrf.mxu0
      %v2365 = vadd.f32 %v2288, %v2364
      %v2366 = vpop.f32.mrf.mxu0
      %2367 = vdwg.mxu0
      %2368 = vmatprep.subr.mxu0 0.0
      %2369 = vmatpush1.msra.mxu0 0.0
      %2370 = vmatprep.subr.mxu0 0.0
      %2371 = vmatpush1.msra.mxu0 0.0
      %2372 = vmatprep.subr.mxu0 0.0
      %2373 = vmatpush1.msra.mxu0 0.0
      %2374 = vmatprep.subr.mxu0 0.0
      %2375 = vmatpush1.msra.mxu0 0.0
      %2376 = vmatprep.subr.mxu0 0.0
      %2377 = vmatpush1.msra.mxu0 0.0
      %2378 = vmatprep.subr.mxu0 0.0
      %2379 = vmatpush1.msra.mxu0 0.0
      %2380 = vmatprep.subr.mxu0 0.0
      %2381 = vmatpush1.msra.mxu0 0.0
      %2382 = vmatprep.subr.mxu0 0.0
      %2383 = vmatpush1.msra.mxu0 0.0
      %2384 = vmatprep.subr.mxu0 0.0
      %2385 = vmatpush1.msra.mxu0 0.0
      %2386 = vmatprep.subr.mxu0 0.0
      %2387 = vmatpush1.msra.mxu0 0.0
      %2388 = vmatprep.subr.mxu0 0.0
      %2389 = vmatpush1.msra.mxu0 0.0
      %2390 = vmatprep.subr.mxu0 0.0
      %2391 = vmatpush1.msra.mxu0 0.0
      %2392 = vmatprep.subr.mxu0 0.0
      %2393 = vmatpush1.msra.mxu0 0.0
      %2394 = vmatprep.subr.mxu0 0.0
      %2395 = vmatpush1.msra.mxu0 0.0
      %2396 = vmatprep.subr.mxu0 0.0
      %v2397 = vand.u32 %v1516, 4294901760
      %2398 = vmatpush1.msra.mxu0 %v2397
      %2399 = vmatprep.subr.mxu0 0.0
      %v2400 = vand.u32 %v1515, 4294901760
      %2401 = vmatpush1.msra.mxu0 %v2400
      %2402 = vmatprep.subr.mxu0 0.0
      %2403 = vmatpush2.msra.mxu0 0.0
      %2404 = vmatprep.subr.mxu0 0.0
      %2405 = vmatpush2.msra.mxu0 0.0
      %2406 = vmatprep.subr.mxu0 0.0
      %2407 = vmatpush2.msra.mxu0 0.0
      %2408 = vmatprep.subr.mxu0 0.0
      %2409 = vmatpush2.msra.mxu0 0.0
      %2410 = vmatprep.subr.mxu0 0.0
      %2411 = vmatpush2.msra.mxu0 0.0
      %2412 = vmatprep.subr.mxu0 0.0
      %2413 = vmatpush2.msra.mxu0 0.0
      %2414 = vmatprep.subr.mxu0 0.0
      %2415 = vmatpush2.msra.mxu0 0.0
      %2416 = vmatprep.subr.mxu0 0.0
      %2417 = vmatpush2.msra.mxu0 0.0
      %2418 = vmatprep.subr.mxu0 0.0
      %2419 = vmatpush2.msra.mxu0 0.0
      %2420 = vmatprep.subr.mxu0 0.0
      %2421 = vmatpush2.msra.mxu0 0.0
      %2422 = vmatprep.subr.mxu0 0.0
      %2423 = vmatpush2.msra.mxu0 0.0
      %2424 = vmatprep.subr.mxu0 0.0
      %2425 = vmatpush2.msra.mxu0 0.0
      %2426 = vmatprep.subr.mxu0 0.0
      %2427 = vmatpush2.msra.mxu0 0.0
      %2428 = vmatprep.subr.mxu0 0.0
      %2429 = vmatpush2.msra.mxu0 0.0
      %2430 = vmatprep.subr.mxu0 0.0
      %2431 = vmatpush2.msra.mxu0 0.0
      %2432 = vmatprep.subr.mxu0 0.0
      %2433 = vmatpush2.msra.mxu0 0.0
      %2434 = vmatprep.mubr.f32.mxu0 0.0
      %v2435 = vand.u32 %v1980, 4294901760
      %2436 = vmatmul.mubr.f32.gmra.mxu0 %v2435
      %v2437 = vpop.f32.mrf.mxu0
      %v2438 = vadd.f32 %v2365, %v2437
      %v2439 = vpop.f32.mrf.mxu0
      %2440 = vdwg.mxu0
      %v2441 = vmul.f32 %v1976, 0.001953125
      %v2443 = vrot.slane %v1339, 1
      %v2445 = vadd.f32 %v2441, %v2443
      %v2446 = vmul.f32 %v2438, 0.001953125
      %v2447 = vrot.slane %v1339, 2
      %v2449 = vadd.f32 %v2446, %v2447
      %v2450 = vmul.f32 %v2445, %v2445
      %v2451 = vsub.f32 %v2449, %v2450
      %v2452 = vadd.f32 %v2451, 1e-05
      %v2453 = vrsqrt.pop %v2452
      %v2454 = vmul.f32 %v2453, %v1340
      %v2455 = vsub.f32 %v1339, %v2445
      %v2456 = vmul.f32 %v2455, %v2454
      %v2458 = vrot.slane %v1340, 1
      %v2460 = vadd.f32 %v2456, %v2458
      %v2461 = vlaneseq
      %v2462 = vshrl.u32 %v2461, 7
      %v2463 = vsub.s32 0, %v2462
      %v2464 = vrot.slane %v2454, %v2463
      %v2465 = vmul.f32 %v1307, %v2464
      %v2466 = vmul.f32 %v1308, %v2464
      %v2467 = vmul.f32 %v1309, %v2464
      %v2468 = vmul.f32 %v1310, %v2464
      %v2469 = vmul.f32 %v1311, %v2464
      %v2470 = vmul.f32 %v1312, %v2464
      %v2471 = vmul.f32 %v1313, %v2464
      %v2472 = vmul.f32 %v1314, %v2464
      %v2473 = vmul.f32 %v1315, %v2464
      %v2474 = vmul.f32 %v1316, %v2464
      %v2475 = vmul.f32 %v1317, %v2464
      %v2476 = vmul.f32 %v1318, %v2464
      %v2477 = vmul.f32 %v1319, %v2464
      %v2478 = vmul.f32 %v1320, %v2464
      %v2479 = vmul.f32 %v1321, %v2464
      %v2480 = vmul.f32 %v1322, %v2464
      %v2481 = vmul.f32 %v1323, %v2464
      %v2482 = vmul.f32 %v1324, %v2464
      %v2483 = vmul.f32 %v1325, %v2464
      %v2484 = vmul.f32 %v1326, %v2464
      %v2485 = vmul.f32 %v1327, %v2464
      %v2486 = vmul.f32 %v1328, %v2464
      %v2487 = vmul.f32 %v1329, %v2464
      %v2488 = vmul.f32 %v1330, %v2464
      %v2489 = vmul.f32 %v1331, %v2464
      %v2490 = vmul.f32 %v1332, %v2464
      %v2491 = vmul.f32 %v1333, %v2464
      %v2492 = vmul.f32 %v1334, %v2464
      %v2493 = vmul.f32 %v1335, %v2464
      %v2494 = vmul.f32 %v1336, %v2464
      %v2495 = vmul.f32 %v1337, %v2464
      %v2496 = vmul.f32 %v1338, %v2464
      %v2497 = vlaneseq
      %v2498 = vshrl.u32 %v2497, 7
      %v2499 = vsub.s32 0, %v2498
      %v2500 = vrot.slane %v2460, %v2499
      %v2501 = vadd.f32 %v2465, %v2500
      %v2502 = vadd.f32 %v2466, %v2500
      %v2503 = vadd.f32 %v2467, %v2500
      %v2504 = vadd.f32 %v2468, %v2500
      %v2505 = vadd.f32 %v2469, %v2500
      %v2506 = vadd.f32 %v2470, %v2500
      %v2507 = vadd.f32 %v2471, %v2500
      %v2508 = vadd.f32 %v2472, %v2500
      %v2509 = vadd.f32 %v2473, %v2500
      %v2510 = vadd.f32 %v2474, %v2500
      %v2511 = vadd.f32 %v2475, %v2500
      %v2512 = vadd.f32 %v2476, %v2500
      %v2513 = vadd.f32 %v2477, %v2500
      %v2514 = vadd.f32 %v2478, %v2500
      %v2515 = vadd.f32 %v2479, %v2500
      %v2516 = vadd.f32 %v2480, %v2500
      %v2517 = vadd.f32 %v2481, %v2500
      %v2518 = vadd.f32 %v2482, %v2500
      %v2519 = vadd.f32 %v2483, %v2500
      %v2520 = vadd.f32 %v2484, %v2500
      %v2521 = vadd.f32 %v2485, %v2500
      %v2522 = vadd.f32 %v2486, %v2500
      %v2523 = vadd.f32 %v2487, %v2500
      %v2524 = vadd.f32 %v2488, %v2500
      %v2525 = vadd.f32 %v2489, %v2500
      %v2526 = vadd.f32 %v2490, %v2500
      %v2527 = vadd.f32 %v2491, %v2500
      %v2528 = vadd.f32 %v2492, %v2500
      %v2529 = vadd.f32 %v2493, %v2500
      %v2530 = vadd.f32 %v2494, %v2500
      %v2531 = vadd.f32 %v2495, %v2500
      %v2532 = vadd.f32 %v2496, %v2500
      %v2533 = vsub.f32 0.0, %v2501
      %v2534 = vsub.f32 0.0, %v2502
      %v2535 = vsub.f32 0.0, %v2503
      %v2536 = vsub.f32 0.0, %v2504
      %v2537 = vsub.f32 0.0, %v2505
      %v2538 = vsub.f32 0.0, %v2506
      %v2539 = vsub.f32 0.0, %v2507
      %v2540 = vsub.f32 0.0, %v2508
      %v2541 = vsub.f32 0.0, %v2509
      %v2542 = vsub.f32 0.0, %v2510
      %v2543 = vsub.f32 0.0, %v2511
      %v2544 = vsub.f32 0.0, %v2512
      %v2545 = vsub.f32 0.0, %v2513
      %v2546 = vsub.f32 0.0, %v2514
      %v2547 = vsub.f32 0.0, %v2515
      %v2548 = vsub.f32 0.0, %v2516
      %v2549 = vsub.f32 0.0, %v2517
      %v2550 = vsub.f32 0.0, %v2518
      %v2551 = vsub.f32 0.0, %v2519
      %v2552 = vsub.f32 0.0, %v2520
      %v2553 = vsub.f32 0.0, %v2521
      %v2554 = vsub.f32 0.0, %v2522
      %v2555 = vsub.f32 0.0, %v2523
      %v2556 = vsub.f32 0.0, %v2524
      %v2557 = vsub.f32 0.0, %v2525
      %v2558 = vsub.f32 0.0, %v2526
      %v2559 = vsub.f32 0.0, %v2527
      %v2560 = vsub.f32 0.0, %v2528
      %v2561 = vsub.f32 0.0, %v2529
      %v2562 = vsub.f32 0.0, %v2530
      %v2563 = vsub.f32 0.0, %v2531
      %v2564 = vsub.f32 0.0, %v2532
      %v2565 = vmul.f32 %v2533, 1.442695
      %v2566 = vpow.pop %v2565
      %v2567 = vmul.f32 %v2534, 1.442695
      %v2568 = vpow.pop %v2567
      %v2569 = vmul.f32 %v2535, 1.442695
      %v2570 = vpow.pop %v2569
      %v2571 = vmul.f32 %v2536, 1.442695
      %v2572 = vpow.pop %v2571
      %v2573 = vmul.f32 %v2537, 1.442695
      %v2574 = vpow.pop %v2573
      %v2575 = vmul.f32 %v2538, 1.442695
      %v2576 = vpow.pop %v2575
      %v2577 = vmul.f32 %v2539, 1.442695
      %v2578 = vpow.pop %v2577
      %v2579 = vmul.f32 %v2540, 1.442695
      %v2580 = vpow.pop %v2579
      %v2581 = vmul.f32 %v2541, 1.442695
      %v2582 = vpow.pop %v2581
      %v2583 = vmul.f32 %v2542, 1.442695
      %v2584 = vpow.pop %v2583
      %v2585 = vmul.f32 %v2543, 1.442695
      %v2586 = vpow.pop %v2585
      %v2587 = vmul.f32 %v2544, 1.442695
      %v2588 = vpow.pop %v2587
      %v2589 = vmul.f32 %v2545, 1.442695
      %v2590 = vpow.pop %v2589
      %v2591 = vmul.f32 %v2546, 1.442695
      %v2592 = vpow.pop %v2591
      %v2593 = vmul.f32 %v2547, 1.442695
      %v2594 = vpow.pop %v2593
      %v2595 = vmul.f32 %v2548, 1.442695
      %v2596 = vpow.pop %v2595
      %v2597 = vmul.f32 %v2549, 1.442695
      %v2598 = vpow.pop %v2597
      %v2599 = vmul.f32 %v2550, 1.442695
      %v2600 = vpow.pop %v2599
      %v2601 = vmul.f32 %v2551, 1.442695
      %v2602 = vpow.pop %v2601
      %v2603 = vmul.f32 %v2552, 1.442695
      %v2604 = vpow.pop %v2603
      %v2605 = vmul.f32 %v2553, 1.442695
      %v2606 = vpow.pop %v2605
      %v2607 = vmul.f32 %v2554, 1.442695
      %v2608 = vpow.pop %v2607
      %v2609 = vmul.f32 %v2555, 1.442695
      %v2610 = vpow.pop %v2609
      %v2611 = vmul.f32 %v2556, 1.442695
      %v2612 = vpow.pop %v2611
      %v2613 = vmul.f32 %v2557, 1.442695
      %v2614 = vpow.pop %v2613
      %v2615 = vmul.f32 %v2558, 1.442695
      %v2616 = vpow.pop %v2615
      %v2617 = vmul.f32 %v2559, 1.442695
      %v2618 = vpow.pop %v2617
      %v2619 = vmul.f32 %v2560, 1.442695
      %v2620 = vpow.pop %v2619
      %v2621 = vmul.f32 %v2561, 1.442695
      %v2622 = vpow.pop %v2621
      %v2623 = vmul.f32 %v2562, 1.442695
      %v2624 = vpow.pop %v2623
      %v2625 = vmul.f32 %v2563, 1.442695
      %v2626 = vpow.pop %v2625
      %v2627 = vmul.f32 %v2564, 1.442695
      %v2628 = vpow.pop %v2627
      %v2629 = vadd.f32 %v2566, 1.0
      %v2630 = vadd.f32 %v2568, 1.0
      %v2631 = vadd.f32 %v2570, 1.0
      %v2632 = vadd.f32 %v2572, 1.0
      %v2633 = vadd.f32 %v2574, 1.0
      %v2634 = vadd.f32 %v2576, 1.0
      %v2635 = vadd.f32 %v2578, 1.0
      %v2636 = vadd.f32 %v2580, 1.0
      %v2637 = vadd.f32 %v2582, 1.0
      %v2638 = vadd.f32 %v2584, 1.0
      %v2639 = vadd.f32 %v2586, 1.0
      %v2640 = vadd.f32 %v2588, 1.0
      %v2641 = vadd.f32 %v2590, 1.0
      %v2642 = vadd.f32 %v2592, 1.0
      %v2643 = vadd.f32 %v2594, 1.0
      %v2644 = vadd.f32 %v2596, 1.0
      %v2645 = vadd.f32 %v2598, 1.0
      %v2646 = vadd.f32 %v2600, 1.0
      %v2647 = vadd.f32 %v2602, 1.0
      %v2648 = vadd.f32 %v2604, 1.0
      %v2649 = vadd.f32 %v2606, 1.0
      %v2650 = vadd.f32 %v2608, 1.0
      %v2651 = vadd.f32 %v2610, 1.0
      %v2652 = vadd.f32 %v2612, 1.0
      %v2653 = vadd.f32 %v2614, 1.0
      %v2654 = vadd.f32 %v2616, 1.0
      %v2655 = vadd.f32 %v2618, 1.0
      %v2656 = vadd.f32 %v2620, 1.0
      %v2657 = vadd.f32 %v2622, 1.0
      %v2658 = vadd.f32 %v2624, 1.0
      %v2659 = vadd.f32 %v2626, 1.0
      %v2660 = vadd.f32 %v2628, 1.0
      %v2661 = vrcp.pop %v2629
      %v2662 = vrcp.pop %v2630
      %v2663 = vrcp.pop %v2631
      %v2664 = vrcp.pop %v2632
      %v2665 = vrcp.pop %v2633
      %v2666 = vrcp.pop %v2634
      %v2667 = vrcp.pop %v2635
      %v2668 = vrcp.pop %v2636
      %v2669 = vrcp.pop %v2637
      %v2670 = vrcp.pop %v2638
      %v2671 = vrcp.pop %v2639
      %v2672 = vrcp.pop %v2640
      %v2673 = vrcp.pop %v2641
      %v2674 = vrcp.pop %v2642
      %v2675 = vrcp.pop %v2643
      %v2676 = vrcp.pop %v2644
      %v2677 = vrcp.pop %v2645
      %v2678 = vrcp.pop %v2646
      %v2679 = vrcp.pop %v2647
      %v2680 = vrcp.pop %v2648
      %v2681 = vrcp.pop %v2649
      %v2682 = vrcp.pop %v2650
      %v2683 = vrcp.pop %v2651
      %v2684 = vrcp.pop %v2652
      %v2685 = vrcp.pop %v2653
      %v2686 = vrcp.pop %v2654
      %v2687 = vrcp.pop %v2655
      %v2688 = vrcp.pop %v2656
      %v2689 = vrcp.pop %v2657
      %v2690 = vrcp.pop %v2658
      %v2691 = vrcp.pop %v2659
      %v2692 = vrcp.pop %v2660
      %v2693 = vmul.f32 %v2501, %v2661
      %v2694 = vmul.f32 %v2502, %v2662
      %v2695 = vmul.f32 %v2503, %v2663
      %v2696 = vmul.f32 %v2504, %v2664
      %v2697 = vmul.f32 %v2505, %v2665
      %v2698 = vmul.f32 %v2506, %v2666
      %v2699 = vmul.f32 %v2507, %v2667
      %v2700 = vmul.f32 %v2508, %v2668
      %v2701 = vmul.f32 %v2509, %v2669
      %v2702 = vmul.f32 %v2510, %v2670
      %v2703 = vmul.f32 %v2511, %v2671
      %v2704 = vmul.f32 %v2512, %v2672
      %v2705 = vmul.f32 %v2513, %v2673
      %v2706 = vmul.f32 %v2514, %v2674
      %v2707 = vmul.f32 %v2515, %v2675
      %v2708 = vmul.f32 %v2516, %v2676
      %v2709 = vmul.f32 %v2517, %v2677
      %v2710 = vmul.f32 %v2518, %v2678
      %v2711 = vmul.f32 %v2519, %v2679
      %v2712 = vmul.f32 %v2520, %v2680
      %v2713 = vmul.f32 %v2521, %v2681
      %v2714 = vmul.f32 %v2522, %v2682
      %v2715 = vmul.f32 %v2523, %v2683
      %v2716 = vmul.f32 %v2524, %v2684
      %v2717 = vmul.f32 %v2525, %v2685
      %v2718 = vmul.f32 %v2526, %v2686
      %v2719 = vmul.f32 %v2527, %v2687
      %v2720 = vmul.f32 %v2528, %v2688
      %v2721 = vmul.f32 %v2529, %v2689
      %v2722 = vmul.f32 %v2530, %v2690
      %v2723 = vmul.f32 %v2531, %v2691
      %v2724 = vmul.f32 %v2532, %v2692
      %v2725 = vpack.c.bf16 %v2694, %v2693
      %v2726 = vpack.c.bf16 %v2696, %v2695
      %v2727 = vpack.c.bf16 %v2698, %v2697
      %v2728 = vpack.c.bf16 %v2700, %v2699
      %v2729 = vpack.c.bf16 %v2702, %v2701
      %v2730 = vpack.c.bf16 %v2704, %v2703
      %v2731 = vpack.c.bf16 %v2706, %v2705
      %v2732 = vpack.c.bf16 %v2708, %v2707
      %v2733 = vpack.c.bf16 %v2710, %v2709
      %v2734 = vpack.c.bf16 %v2712, %v2711
      %v2735 = vpack.c.bf16 %v2714, %v2713
      %v2736 = vpack.c.bf16 %v2716, %v2715
      %v2737 = vpack.c.bf16 %v2718, %v2717
      %v2738 = vpack.c.bf16 %v2720, %v2719
      %v2739 = vpack.c.bf16 %v2722, %v2721
      %v2740 = vpack.c.bf16 %v2724, %v2723
      %v2757 = vunpack.c.l.b16 %v2725
      %v2758 = vunpack.c.h.b16 %v2725
      %v2759 = vunpack.c.l.b16 %v2726
      %v2760 = vunpack.c.h.b16 %v2726
      %v2761 = vunpack.c.l.b16 %v2727
      %v2762 = vunpack.c.h.b16 %v2727
      %v2763 = vunpack.c.l.b16 %v2728
      %v2764 = vunpack.c.h.b16 %v2728
      %v2765 = vunpack.c.l.b16 %v2729
      %v2766 = vunpack.c.h.b16 %v2729
      %v2767 = vunpack.c.l.b16 %v2730
      %v2768 = vunpack.c.h.b16 %v2730
      %v2769 = vunpack.c.l.b16 %v2731
      %v2770 = vunpack.c.h.b16 %v2731
      %v2771 = vunpack.c.l.b16 %v2732
      %v2772 = vunpack.c.h.b16 %v2732
      %v2773 = vunpack.c.l.b16 %v2733
      %v2774 = vunpack.c.h.b16 %v2733
      %v2775 = vunpack.c.l.b16 %v2734
      %v2776 = vunpack.c.h.b16 %v2734
      %v2777 = vunpack.c.l.b16 %v2735
      %v2778 = vunpack.c.h.b16 %v2735
      %v2779 = vunpack.c.l.b16 %v2736
      %v2780 = vunpack.c.h.b16 %v2736
      %v2781 = vunpack.c.l.b16 %v2737
      %v2782 = vunpack.c.h.b16 %v2737
      %v2783 = vunpack.c.l.b16 %v2738
      %v2784 = vunpack.c.h.b16 %v2738
      %v2785 = vunpack.c.l.b16 %v2739
      %v2786 = vunpack.c.h.b16 %v2739
      %v2787 = vunpack.c.l.b16 %v2740
      %v2788 = vunpack.c.h.b16 %v2740
      %v2789 = vpack.c.b16 %v2757, %v2757
      %v2790 = vpack.c.b16 %v2758, %v2758
      %v2791 = vpack.c.b16 %v2759, %v2759
      %v2792 = vpack.c.b16 %v2760, %v2760
      %v2793 = vpack.c.b16 %v2761, %v2761
      %v2794 = vpack.c.b16 %v2762, %v2762
      %v2795 = vpack.c.b16 %v2763, %v2763
      %v2796 = vpack.c.b16 %v2764, %v2764
      %v2797 = vpack.c.b16 %v2765, %v2765
      %v2798 = vpack.c.b16 %v2766, %v2766
      %v2799 = vpack.c.b16 %v2767, %v2767
      %v2800 = vpack.c.b16 %v2768, %v2768
      %v2801 = vpack.c.b16 %v2769, %v2769
      %v2802 = vpack.c.b16 %v2770, %v2770
      %v2803 = vpack.c.b16 %v2771, %v2771
      %v2804 = vpack.c.b16 %v2772, %v2772
      %v2805 = vpack.c.b16 %v2773, %v2773
      %v2806 = vpack.c.b16 %v2774, %v2774
      %v2807 = vpack.c.b16 %v2775, %v2775
      %v2808 = vpack.c.b16 %v2776, %v2776
      %v2809 = vpack.c.b16 %v2777, %v2777
      %v2810 = vpack.c.b16 %v2778, %v2778
      %v2811 = vpack.c.b16 %v2779, %v2779
      %v2812 = vpack.c.b16 %v2780, %v2780
      %v2813 = vpack.c.b16 %v2781, %v2781
      %v2814 = vpack.c.b16 %v2782, %v2782
      %v2815 = vpack.c.b16 %v2783, %v2783
      %v2816 = vpack.c.b16 %v2784, %v2784
      %v2817 = vpack.c.b16 %v2785, %v2785
      %v2818 = vpack.c.b16 %v2786, %v2786
      %v2819 = vpack.c.b16 %v2787, %v2787
      %v2820 = vpack.c.b16 %v2788, %v2788
      %vm2853 = vcmask 125952
      %2854 = vst.msk [vmem:[%s306] sm:$0xf] %vm2853, %v2789
      %2855 = vst.msk [vmem:[%s306 + $0x4] sm:$0xf] %vm2853, %v2790
      %2856 = vst.msk [vmem:[%s306 + $0x8] sm:$0xf] %vm2853, %v2791
      %2857 = vst.msk [vmem:[%s306 + $0xc] sm:$0xf] %vm2853, %v2792
      %2858 = vst.msk [vmem:[%s306 + $0x10] sm:$0xf] %vm2853, %v2793
      %2859 = vst.msk [vmem:[%s306 + $0x14] sm:$0xf] %vm2853, %v2794
      %2860 = vst.msk [vmem:[%s306 + $0x18] sm:$0xf] %vm2853, %v2795
      %2861 = vst.msk [vmem:[%s306 + $0x1c] sm:$0xf] %vm2853, %v2796
      %2862 = vst.msk [vmem:[%s306 + $0x20] sm:$0xf] %vm2853, %v2797
      %2863 = vst.msk [vmem:[%s306 + $0x24] sm:$0xf] %vm2853, %v2798
      %2864 = vst.msk [vmem:[%s306 + $0x28] sm:$0xf] %vm2853, %v2799
      %2865 = vst.msk [vmem:[%s306 + $0x2c] sm:$0xf] %vm2853, %v2800
      %2866 = vst.msk [vmem:[%s306 + $0x30] sm:$0xf] %vm2853, %v2801
      %2867 = vst.msk [vmem:[%s306 + $0x34] sm:$0xf] %vm2853, %v2802
      %2868 = vst.msk [vmem:[%s306 + $0x38] sm:$0xf] %vm2853, %v2803
      %2869 = vst.msk [vmem:[%s306 + $0x3c] sm:$0xf] %vm2853, %v2804
      %2870 = vst.msk [vmem:[%s306 + $0x40] sm:$0xf] %vm2853, %v2805
      %2871 = vst.msk [vmem:[%s306 + $0x44] sm:$0xf] %vm2853, %v2806
      %2872 = vst.msk [vmem:[%s306 + $0x48] sm:$0xf] %vm2853, %v2807
      %2873 = vst.msk [vmem:[%s306 + $0x4c] sm:$0xf] %vm2853, %v2808
      %2874 = vst.msk [vmem:[%s306 + $0x50] sm:$0xf] %vm2853, %v2809
      %2875 = vst.msk [vmem:[%s306 + $0x54] sm:$0xf] %vm2853, %v2810
      %2876 = vst.msk [vmem:[%s306 + $0x58] sm:$0xf] %vm2853, %v2811
      %2877 = vst.msk [vmem:[%s306 + $0x5c] sm:$0xf] %vm2853, %v2812
      %2878 = vst.msk [vmem:[%s306 + $0x60] sm:$0xf] %vm2853, %v2813
      %2879 = vst.msk [vmem:[%s306 + $0x64] sm:$0xf] %vm2853, %v2814
      %2880 = vst.msk [vmem:[%s306 + $0x68] sm:$0xf] %vm2853, %v2815
      %2881 = vst.msk [vmem:[%s306 + $0x6c] sm:$0xf] %vm2853, %v2816
      %2882 = vst.msk [vmem:[%s306 + $0x70] sm:$0xf] %vm2853, %v2817
      %2883 = vst.msk [vmem:[%s306 + $0x74] sm:$0xf] %vm2853, %v2818
      %2884 = vst.msk [vmem:[%s306 + $0x78] sm:$0xf] %vm2853, %v2819
      %2885 = vst.msk [vmem:[%s306 + $0x7c] sm:$0xf] %vm2853, %v2820
      %p2886 = scmp.lt.s32.totalorder %s20, 1
      %s2887 = scalar_select %p2886, %s20, 1
      %p2888 = scmp.lt.s32.totalorder %s21, 0
      %s2889 = scalar_select %p2888, %s21, 0
      %s2890 = smul.addr %s2887, 32
      %s2891 = sadd.s32 %s2889, %s2890
      %s2892 = smul.addr %s2891, 4
      %s2893 = scalar_lea.vmem %s5, %s2892
      // Predicated region
      $region41: #{tpu_custom_call.1} parent=39 // pred_check
        %p2894 = pneg %p175
      $region42: #{tpu_custom_call.1} parent=39 // pred_check_branch
        %2896 = sbr.rel (%p2894) target = $region44
      $region43: #{tpu_custom_call.1} parent=39 // pred_region
        _
      $region44: #{tpu_custom_call.1} parent=39 // pred_fallthru
        _
    $region40: #{tpu_custom_call.1} parent=5 // pred_fallthru
      _
    %p2897 = scmp.le.s32.totalorder 2, %s11
    // Predicated region
    $region45: #{tpu_custom_call.1} parent=5 // pred_check
      %p2898 = pneg %p2897
    $region46: #{tpu_custom_call.1} parent=5 // pred_check_branch
      %2900 = sbr.rel (%p2898) target = $region48
    $region47: #{tpu_custom_call.1} parent=5 // pred_region
      %s2901 = ssub.s32 %s11, 2
      // Predicated region
      $region49: #{tpu_custom_call.1} parent=47 // pred_check
        %p2902 = pneg %p181
      $region50: #{tpu_custom_call.1} parent=47 // pred_check_branch
        %2904 = sbr.rel (%p2902) target = $region52
      $region51: #{tpu_custom_call.1} parent=47 // pred_region
        %p2905 = scmp.lt.s32.totalorder %s22, 1
        %s2906 = scalar_select %p2905, %s22, 1
        %p2907 = scmp.lt.s32.totalorder %s23, 0
        %s2908 = scalar_select %p2907, %s23, 0
        %s2909 = smul.addr %s2906, 32
        %s2910 = sadd.s32 %s2908, %s2909
        %s2911 = smul.addr %s2910, 4
        %s2912 = scalar_lea.vmem %s5, %s2911
      $region52: #{tpu_custom_call.1} parent=47 // pred_fallthru
        _
    $region48: #{tpu_custom_call.1} parent=5 // pred_fallthru
      _
  $region6: #{tpu_custom_call.1} parent=0 // loop_footer
    %s15 = sadd.s32 1, %s11
  $region7: #{tpu_custom_call.1} parent=0 // loop_footer_branch
    %10 = sbr.rel target = $region3
  $region8: #{tpu_custom_call.1} parent=0 // loop_exit
    _

</llo_original>
